<compile_context>
chip_gen: v7x
topology: tpu7x:2x2x1
jax: 0.10.0
libtpu: 0.0.40
codegen_flags: <defaults>
</compile_context>

<pallas_src>
import functools
import math
from dataclasses import dataclass

import jax
import jax.numpy as jnp
from jax.experimental import pallas as pl
from jax.experimental.pallas import tpu as pltpu


# -----------------------------------------------------------------------------
# In-kernel helpers
# -----------------------------------------------------------------------------
def _layer_norm(v, w, b, eps):
    """LayerNorm over the last (lane) dim; rsqrt goes to the (otherwise idle) EUP."""
    mu = jnp.mean(v, axis=-1, keepdims=True)
    c = v - mu
    var = jnp.mean(c * c, axis=-1, keepdims=True)
    return c * jax.lax.rsqrt(var + eps) * w + b


# -----------------------------------------------------------------------------
# Fused encoder-layer kernel: one grid step == TB batch elements.
# -----------------------------------------------------------------------------
def _encoder_layer_kernel(
    x_ref,                        # (TB, L, D)  activations
    wqkv_ref, bqkv_ref,           # (D, 3D) bf16, (1, 3D) f32
    wo_ref, bo_ref,               # (D, D)  bf16, (1, D)  f32
    ln1w_ref, ln1b_ref,           # (1, D), (1, D)
    w1_ref, b1_ref,               # (D, F)  bf16, (1, F)  f32
    w2_ref, b2_ref,               # (F, D)  bf16, (1, D)  f32
    ln2w_ref, ln2b_ref,           # (1, D), (1, D)
    o_ref,                        # (TB, L, D)
    *, n_heads, eps, scale):
    TB, L, D = x_ref.shape
    H = n_heads
    E = D // H
    rows = TB * L

    # Flatten the batch block so every projection/FFN matmul fills the MXU rows.
    x = x_ref[...].astype(jnp.float32).reshape(rows, D)

    # ---- Fused Q/K/V projection: one lane-dense MXU call -------------------
    qkv = jnp.dot(x.astype(jnp.bfloat16), wqkv_ref[...],
                  preferred_element_type=jnp.float32) + bqkv_ref[...]    # (rows, 3D)

    # ---- Multi-head self-attention (mask_flag=False → no mask) -------------
    # Static unroll over heads (H is small here).
    # TODO(synk): for production-sized H, switch to lax.fori_loop(..., unroll=True)
    # to bound vreg live ranges.
    head_outs = []
    for h in range(H):
        # Pre-scale q (smaller than scaling the (L,L) scores).
        qh = (qkv[:, h * E:(h + 1) * E] * scale).reshape(TB, L, E).astype(jnp.bfloat16)
        kh = qkv[:, D + h * E:D + (h + 1) * E].reshape(TB, L, E).astype(jnp.bfloat16)
        vh = qkv[:, 2 * D + h * E:2 * D + (h + 1) * E].reshape(TB, L, E).astype(jnp.bfloat16)

        s = jnp.einsum("bqe,bke->bqk", qh, kh,
                       preferred_element_type=jnp.float32)               # (TB, L, L)
        s = s - jnp.max(s, axis=-1, keepdims=True)
        p = jnp.exp(s)
        # EUP reciprocal (approx): essentially free bundle slot.
        p = p * pl.reciprocal(jnp.sum(p, axis=-1, keepdims=True), approx=True)
        oh = jnp.einsum("bqk,bke->bqe", p.astype(jnp.bfloat16), vh,
                        preferred_element_type=jnp.float32)              # (TB, L, E)
        head_outs.append(oh)

    # Assemble all heads, then ONE output projection matmul.
    o_heads = jnp.concatenate(head_outs, axis=-1).reshape(rows, D)       # (rows, D)
    attn = jnp.dot(o_heads.astype(jnp.bfloat16), wo_ref[...],
                   preferred_element_type=jnp.float32) + bo_ref[...]
    # TODO(synk): attention / residual dropout omitted (inference mode → identity).

    y = _layer_norm(x + attn, ln1w_ref[...], ln1b_ref[...], eps)

    # ---- Feed-forward -------------------------------------------------------
    hdn = jnp.dot(y.astype(jnp.bfloat16), w1_ref[...],
                  preferred_element_type=jnp.float32) + b1_ref[...]
    # TODO(synk): torch nn.GELU() is exact erf-GELU; tanh approximation used here.
    hdn = jax.nn.gelu(hdn, approximate=True)
    ffn = jnp.dot(hdn.astype(jnp.bfloat16), w2_ref[...],
                  preferred_element_type=jnp.float32) + b2_ref[...]

    z = _layer_norm(y + ffn, ln2w_ref[...], ln2b_ref[...], eps)
    # NOTE: with d_model < 128 (toy shape) this store is a masked vst; production
    # d_model should be a multiple of 128 for unmasked lane-dense writebacks.
    o_ref[...] = z.reshape(TB, L, D).astype(o_ref.dtype)


# -----------------------------------------------------------------------------
# pallas_call plumbing
# -----------------------------------------------------------------------------
def _resident_spec(arr):
    """Whole-array block with a constant index map → fetched once, kept resident.
    (For very large production weights one would additionally single-buffer these
    via pipeline_mode=pl.Buffered(1) or pl.ANY + one-time manual copy.)"""
    nd = arr.ndim
    return pl.BlockSpec(arr.shape, lambda i, _n=nd: (0,) * _n)


def _pick_batch_block(batch, seq_len, target_rows=128):
    """Largest divisor of `batch` whose row count TB*L is ≤ ~128 (fills MXU rows)."""
    tb = max(1, min(batch, max(1, target_rows // max(seq_len, 1))))
    while batch % tb:
        tb -= 1
    return max(tb, 1)


def _physical_vmem_bytes():
    try:
        info = pltpu.get_tpu_info()
        cap = getattr(info, "vmem_capacity_bytes", None)
        if cap:
            return int(cap)
    except Exception:
        pass
    return 64 << 20  # conservative fallback (v7x per-TC VMEM)


def _vmem_limit_bytes(tb, L, D, F, H):
    """Generation-aware scoped-VMEM budget: estimate usage, clamp to 75% of the
    physical VMEM of the chip we are compiling for (≈48 MiB on v7x, ≈96 MiB on
    v5e/v6e's 128 MiB parts)."""
    rows = tb * L
    f32, bf16 = 4, 2
    io = 2 * 2 * tb * L * D * f32                      # x / out blocks, double-buffered
    w = 2 * (4 * D * D + 2 * D * F) * bf16             # bf16 weights, double-buffered
    vec = 2 * (9 * D + 2 * F) * f32                    # biases + LN params
    tmp = f32 * (rows * (11 * D + 3 * F)               # qkv / attn / y / ffn temporaries
                 + 4 * tb * L * L                      # per-head scores
                 + 8 * rows * (D // H))                # per-head q/k/v/o temporaries
    est = int(1.5 * (io + w + vec + tmp))
    cap = _physical_vmem_bytes()
    return int(min(max(est, 32 << 20), int(0.75 * cap)))


def encoder_layer_forward(x, params, *, n_heads, eps=1e-5, batch_block=None):
    B, L, D = x.shape
    H = n_heads
    assert D % H == 0, "d_model must be divisible by n_heads"
    E = D // H
    F = params["w1"].shape[1]
    scale = 1.0 / math.sqrt(E)

    tb = batch_block or _pick_batch_block(B, L)

    # Host-side weight prep: fuse Q/K/V into one (D, 3D) bf16 weight, keep the
    # output-projection / FFN weights whole (single MXU calls in the kernel).
    wqkv = jnp.concatenate([params["wq"], params["wk"], params["wv"]],
                           axis=1).astype(jnp.bfloat16)                 # (D, 3D)
    bqkv = jnp.concatenate([params["bq"], params["bk"], params["bv"]], axis=1)  # (1, 3D)
    wo = params["wo"].astype(jnp.bfloat16)                              # (D, D)
    w1 = params["w1"].astype(jnp.bfloat16)                              # (D, F)
    w2 = params["w2"].astype(jnp.bfloat16)                              # (F, D)

    operands = (x, wqkv, bqkv, wo, params["bo"],
                params["ln1_w"], params["ln1_b"],
                w1, params["b1"], w2, params["b2"],
                params["ln2_w"], params["ln2_b"])

    x_spec = pl.BlockSpec((tb, L, D), lambda i: (i, 0, 0))
    in_specs = [x_spec] + [_resident_spec(a) for a in operands[1:]]
    out_spec = pl.BlockSpec((tb, L, D), lambda i: (i, 0, 0))

    kernel = functools.partial(_encoder_layer_kernel,
                               n_heads=H, eps=eps, scale=scale)
    return pl.pallas_call(
        kernel,
        out_shape=jax.ShapeDtypeStruct((B, L, D), x.dtype),
        grid_spec=pltpu.PrefetchScalarGridSpec(
            num_scalar_prefetch=0,
            grid=(B // tb,),
            in_specs=in_specs,
            out_specs=out_spec,
        ),
        compiler_params=pltpu.CompilerParams(
            dimension_semantics=("parallel",),
            vmem_limit_bytes=_vmem_limit_bytes(tb, L, D, F, H),
        ),
    )(*operands)


# -----------------------------------------------------------------------------
# Module wrapper (mirrors the PyTorch EncoderLayer, inference mode)
# -----------------------------------------------------------------------------
@dataclass
class ITransformerConfig:
    d_model: int = 64
    n_heads: int = 4
    d_ff: int = 128
    dropout: float = 0.1
    factor: int = 5


def _linear_init(key, fan_in, fan_out):
    kw, kb = jax.random.split(key)
    bound = 1.0 / math.sqrt(fan_in)
    w = jax.random.uniform(kw, (fan_in, fan_out), jnp.float32, -bound, bound)
    b = jax.random.uniform(kb, (1, fan_out), jnp.float32, -bound, bound)
    return w, b


class EncoderLayerPallas:
    def __init__(self, config, key):
        D, F = config.d_model, config.d_ff
        self.n_heads = config.n_heads
        self.eps = 1e-5  # nn.LayerNorm default
        ks = jax.random.split(key, 6)
        p = {}
        p["wq"], p["bq"] = _linear_init(ks[0], D, D)
        p["wk"], p["bk"] = _linear_init(ks[1], D, D)
        p["wv"], p["bv"] = _linear_init(ks[2], D, D)
        p["wo"], p["bo"] = _linear_init(ks[3], D, D)
        p["w1"], p["b1"] = _linear_init(ks[4], D, F)
        p["w2"], p["b2"] = _linear_init(ks[5], F, D)
        p["ln1_w"] = jnp.ones((1, D), jnp.float32)
        p["ln1_b"] = jnp.zeros((1, D), jnp.float32)
        p["ln2_w"] = jnp.ones((1, D), jnp.float32)
        p["ln2_b"] = jnp.zeros((1, D), jnp.float32)
        self.params = p

    def __call__(self, x, attn_mask=None):
        # EncoderLayer builds FullAttention(mask_flag=False) → attn_mask unused.
        # Dropout layers are identity at inference.
        return encoder_layer_forward(x, self.params,
                                     n_heads=self.n_heads, eps=self.eps)


# -----------------------------------------------------------------------------
# Pure-JAX f32 reference for sanity checking
# -----------------------------------------------------------------------------
def _ref_encoder_layer(x, p, n_heads, eps):
    B, L, D = x.shape
    H = n_heads
    E = D // H
    hp = jax.lax.Precision.HIGHEST
    q = (jnp.dot(x, p["wq"], precision=hp) + p["bq"]).reshape(B, L, H, E)
    k = (jnp.dot(x, p["wk"], precision=hp) + p["bk"]).reshape(B, L, H, E)
    v = (jnp.dot(x, p["wv"], precision=hp) + p["bv"]).reshape(B, L, H, E)
    scale = 1.0 / math.sqrt(E)
    scores = jnp.einsum("blhe,bshe->bhls", q, k, precision=hp)
    A = jax.nn.softmax(scale * scores, axis=-1)
    o = jnp.einsum("bhls,bshd->blhd", A, v, precision=hp).reshape(B, L, D)
    o = jnp.dot(o, p["wo"], precision=hp) + p["bo"]

    def ln(v_, w, b):
        mu = jnp.mean(v_, axis=-1, keepdims=True)
        c = v_ - mu
        var = jnp.mean(c * c, axis=-1, keepdims=True)
        return c * jax.lax.rsqrt(var + eps) * w + b

    y = ln(x + o, p["ln1_w"], p["ln1_b"])
    h = jax.nn.gelu(jnp.dot(y, p["w1"], precision=hp) + p["b1"], approximate=True)
    f = jnp.dot(h, p["w2"], precision=hp) + p["b2"]
    return ln(y + f, p["ln2_w"], p["ln2_b"])


if __name__ == "__main__":
    cfg = ITransformerConfig(d_model=64, n_heads=4, d_ff=128, dropout=0.1, factor=5)
    B, L = 2, 16

    key = jax.random.PRNGKey(0)
    k_params, k_x = jax.random.split(key)
    layer = EncoderLayerPallas(cfg, k_params)
    x = jax.random.normal(k_x, (B, L, cfg.d_model), jnp.float32)

    y = layer(x)
    jax.block_until_ready(y)

    y_ref = _ref_encoder_layer(x, layer.params, cfg.n_heads, layer.eps)
    err = float(jnp.max(jnp.abs(y - y_ref)))
    assert y.shape == (B, L, cfg.d_model)
    # Tolerance sized for bf16 MXU operands (f32 accumulation) vs an f32 reference.
    assert jnp.allclose(y, y_ref, atol=3e-2, rtol=3e-2), f"max abs err {err}"
    print("KERNEL_OK")
</pallas_src>

<mosaic_0001>
module attributes {stable_mosaic.version = 11 : i64} {
  func.func @_encoder_layer_kernel(%arg0: i32, %arg1: memref<2x16x64xf32, #tpu.memory_space<vmem>>, %arg2: memref<64x192xbf16, #tpu.memory_space<vmem>>, %arg3: memref<1x192xf32, #tpu.memory_space<vmem>>, %arg4: memref<64x64xbf16, #tpu.memory_space<vmem>>, %arg5: memref<1x64xf32, #tpu.memory_space<vmem>>, %arg6: memref<1x64xf32, #tpu.memory_space<vmem>>, %arg7: memref<1x64xf32, #tpu.memory_space<vmem>>, %arg8: memref<64x128xbf16, #tpu.memory_space<vmem>>, %arg9: memref<1x128xf32, #tpu.memory_space<vmem>>, %arg10: memref<128x64xbf16, #tpu.memory_space<vmem>>, %arg11: memref<1x64xf32, #tpu.memory_space<vmem>>, %arg12: memref<1x64xf32, #tpu.memory_space<vmem>>, %arg13: memref<1x64xf32, #tpu.memory_space<vmem>>, %arg14: memref<2x16x64xf32, #tpu.memory_space<vmem>>) attributes {dimension_semantics = [#tpu.dimension_semantics<parallel>], iteration_bounds = array<i64: 1>, scalar_prefetch = 0 : i64, scratch_operands = 0 : i64, tpu.core_type = #tpu.core_type<tc>, window_params = [{transform_indices = @transform_0, window_bounds = array<i64: 2, 16, 64>}, {pipeline_mode = #tpu.pipeline_mode<synchronous>, transform_indices = @transform_1, window_bounds = array<i64: 64, 192>}, {pipeline_mode = #tpu.pipeline_mode<synchronous>, transform_indices = @transform_2, window_bounds = array<i64: 1, 192>}, {pipeline_mode = #tpu.pipeline_mode<synchronous>, transform_indices = @transform_3, window_bounds = array<i64: 64, 64>}, {pipeline_mode = #tpu.pipeline_mode<synchronous>, transform_indices = @transform_4, window_bounds = array<i64: 1, 64>}, {pipeline_mode = #tpu.pipeline_mode<synchronous>, transform_indices = @transform_5, window_bounds = array<i64: 1, 64>}, {pipeline_mode = #tpu.pipeline_mode<synchronous>, transform_indices = @transform_6, window_bounds = array<i64: 1, 64>}, {pipeline_mode = #tpu.pipeline_mode<synchronous>, transform_indices = @transform_7, window_bounds = array<i64: 64, 128>}, {pipeline_mode = #tpu.pipeline_mode<synchronous>, transform_indices = @transform_8, window_bounds = array<i64: 1, 128>}, {pipeline_mode = #tpu.pipeline_mode<synchronous>, transform_indices = @transform_9, window_bounds = array<i64: 128, 64>}, {pipeline_mode = #tpu.pipeline_mode<synchronous>, transform_indices = @transform_10, window_bounds = array<i64: 1, 64>}, {pipeline_mode = #tpu.pipeline_mode<synchronous>, transform_indices = @transform_11, window_bounds = array<i64: 1, 64>}, {pipeline_mode = #tpu.pipeline_mode<synchronous>, transform_indices = @transform_12, window_bounds = array<i64: 1, 64>}, {transform_indices = @transform_13, window_bounds = array<i64: 2, 16, 64>}]} {
    %c0 = arith.constant 0 : index
    %c0_0 = arith.constant 0 : index
    %c0_1 = arith.constant 0 : index
    %0 = vector.load %arg1[%c0, %c0_0, %c0_1] : memref<2x16x64xf32, #tpu.memory_space<vmem>>, vector<2x16x64xf32>
    %1 = vector.shape_cast %0 : vector<2x16x64xf32> to vector<32x64xf32>
    %2 = arith.truncf %1 : vector<32x64xf32> to vector<32x64xbf16>
    %c0_2 = arith.constant 0 : index
    %c0_3 = arith.constant 0 : index
    %3 = vector.load %arg2[%c0_2, %c0_3] : memref<64x192xbf16, #tpu.memory_space<vmem>>, vector<64x192xbf16>
    %cst = arith.constant dense<0.000000e+00> : vector<32x192xf32>
    %4 = tpu.matmul %2, %3, %cst {dimension_numbers = #tpu.dot_dimension_numbers<[1], [0], [0], [1], [0, 0, 1, 1], [], []>} : vector<32x64xbf16>, vector<64x192xbf16>, vector<32x192xf32> -> vector<32x192xf32>
    %c0_4 = arith.constant 0 : index
    %c0_5 = arith.constant 0 : index
    %5 = vector.load %arg3[%c0_4, %c0_5] : memref<1x192xf32, #tpu.memory_space<vmem>>, vector<1x192xf32>
    %6 = vector.broadcast %5 : vector<1x192xf32> to vector<32x192xf32>
    %7 = arith.addf %4, %6 : vector<32x192xf32>
    %8 = vector.extract_strided_slice %7 {offsets = [0, 0], sizes = [32, 16], strides = [1, 1]} : vector<32x192xf32> to vector<32x16xf32>
    %cst_6 = arith.constant 2.500000e-01 : f32
    %9 = vector.broadcast %cst_6 : f32 to vector<32x16xf32>
    %10 = arith.mulf %8, %9 : vector<32x16xf32>
    %11 = vector.shape_cast %10 : vector<32x16xf32> to vector<2x16x16xf32>
    %12 = arith.truncf %11 : vector<2x16x16xf32> to vector<2x16x16xbf16>
    %13 = vector.extract_strided_slice %7 {offsets = [0, 64], sizes = [32, 16], strides = [1, 1]} : vector<32x192xf32> to vector<32x16xf32>
    %14 = vector.shape_cast %13 : vector<32x16xf32> to vector<2x16x16xf32>
    %15 = arith.truncf %14 : vector<2x16x16xf32> to vector<2x16x16xbf16>
    %16 = vector.extract_strided_slice %7 {offsets = [0, 128], sizes = [32, 16], strides = [1, 1]} : vector<32x192xf32> to vector<32x16xf32>
    %17 = vector.shape_cast %16 : vector<32x16xf32> to vector<2x16x16xf32>
    %18 = arith.truncf %17 : vector<2x16x16xf32> to vector<2x16x16xbf16>
    "tpu.trace_start"() <{level = 10 : i32, message = "bqe,bke->bqk"}> : () -> ()
    %cst_7 = arith.constant dense<0.000000e+00> : vector<2x16x16xf32>
    %19 = tpu.matmul %12, %15, %cst_7 {dimension_numbers = #tpu.dot_dimension_numbers<[2], [2], [1], [1], [0, 0, 0, 1, 1, 1], [0], [0]>} : vector<2x16x16xbf16>, vector<2x16x16xbf16>, vector<2x16x16xf32> -> vector<2x16x16xf32>
    "tpu.trace_stop"() : () -> ()
    %cst_8 = arith.constant dense<0xFF800000> : vector<2x16xf32>
    %20 = vector.multi_reduction <maximumf>, %19, %cst_8 [2] : vector<2x16x16xf32> to vector<2x16xf32>
    %21 = vector.shape_cast %20 : vector<2x16xf32> to vector<2x16x1xf32>
    %22 = vector.broadcast %21 : vector<2x16x1xf32> to vector<2x16x16xf32>
    %23 = arith.subf %19, %22 : vector<2x16x16xf32>
    %24 = math.exp %23 : vector<2x16x16xf32>
    %cst_9 = arith.constant dense<0.000000e+00> : vector<2x16xf32>
    %25 = vector.multi_reduction <add>, %24, %cst_9 [2] : vector<2x16x16xf32> to vector<2x16xf32>
    %26 = vector.shape_cast %25 : vector<2x16xf32> to vector<2x16x1xf32>
    %27 = tpu.reciprocal %26 {approx = true} : vector<2x16x1xf32> -> vector<2x16x1xf32>
    %28 = vector.broadcast %27 : vector<2x16x1xf32> to vector<2x16x16xf32>
    %29 = arith.mulf %24, %28 : vector<2x16x16xf32>
    %30 = arith.truncf %29 : vector<2x16x16xf32> to vector<2x16x16xbf16>
    "tpu.trace_start"() <{level = 10 : i32, message = "bqk,bke->bqe"}> : () -> ()
    %cst_10 = arith.constant dense<0.000000e+00> : vector<2x16x16xf32>
    %31 = tpu.matmul %30, %18, %cst_10 {dimension_numbers = #tpu.dot_dimension_numbers<[2], [1], [1], [2], [0, 0, 0, 1, 1, 2], [0], [0]>} : vector<2x16x16xbf16>, vector<2x16x16xbf16>, vector<2x16x16xf32> -> vector<2x16x16xf32>
    "tpu.trace_stop"() : () -> ()
    %32 = vector.extract_strided_slice %7 {offsets = [0, 16], sizes = [32, 16], strides = [1, 1]} : vector<32x192xf32> to vector<32x16xf32>
    %cst_11 = arith.constant 2.500000e-01 : f32
    %33 = vector.broadcast %cst_11 : f32 to vector<32x16xf32>
    %34 = arith.mulf %32, %33 : vector<32x16xf32>
    %35 = vector.shape_cast %34 : vector<32x16xf32> to vector<2x16x16xf32>
    %36 = arith.truncf %35 : vector<2x16x16xf32> to vector<2x16x16xbf16>
    %37 = vector.extract_strided_slice %7 {offsets = [0, 80], sizes = [32, 16], strides = [1, 1]} : vector<32x192xf32> to vector<32x16xf32>
    %38 = vector.shape_cast %37 : vector<32x16xf32> to vector<2x16x16xf32>
    %39 = arith.truncf %38 : vector<2x16x16xf32> to vector<2x16x16xbf16>
    %40 = vector.extract_strided_slice %7 {offsets = [0, 144], sizes = [32, 16], strides = [1, 1]} : vector<32x192xf32> to vector<32x16xf32>
    %41 = vector.shape_cast %40 : vector<32x16xf32> to vector<2x16x16xf32>
    %42 = arith.truncf %41 : vector<2x16x16xf32> to vector<2x16x16xbf16>
    "tpu.trace_start"() <{level = 10 : i32, message = "bqe,bke->bqk"}> : () -> ()
    %cst_12 = arith.constant dense<0.000000e+00> : vector<2x16x16xf32>
    %43 = tpu.matmul %36, %39, %cst_12 {dimension_numbers = #tpu.dot_dimension_numbers<[2], [2], [1], [1], [0, 0, 0, 1, 1, 1], [0], [0]>} : vector<2x16x16xbf16>, vector<2x16x16xbf16>, vector<2x16x16xf32> -> vector<2x16x16xf32>
    "tpu.trace_stop"() : () -> ()
    %cst_13 = arith.constant dense<0xFF800000> : vector<2x16xf32>
    %44 = vector.multi_reduction <maximumf>, %43, %cst_13 [2] : vector<2x16x16xf32> to vector<2x16xf32>
    %45 = vector.shape_cast %44 : vector<2x16xf32> to vector<2x16x1xf32>
    %46 = vector.broadcast %45 : vector<2x16x1xf32> to vector<2x16x16xf32>
    %47 = arith.subf %43, %46 : vector<2x16x16xf32>
    %48 = math.exp %47 : vector<2x16x16xf32>
    %cst_14 = arith.constant dense<0.000000e+00> : vector<2x16xf32>
    %49 = vector.multi_reduction <add>, %48, %cst_14 [2] : vector<2x16x16xf32> to vector<2x16xf32>
    %50 = vector.shape_cast %49 : vector<2x16xf32> to vector<2x16x1xf32>
    %51 = tpu.reciprocal %50 {approx = true} : vector<2x16x1xf32> -> vector<2x16x1xf32>
    %52 = vector.broadcast %51 : vector<2x16x1xf32> to vector<2x16x16xf32>
    %53 = arith.mulf %48, %52 : vector<2x16x16xf32>
    %54 = arith.truncf %53 : vector<2x16x16xf32> to vector<2x16x16xbf16>
    "tpu.trace_start"() <{level = 10 : i32, message = "bqk,bke->bqe"}> : () -> ()
    %cst_15 = arith.constant dense<0.000000e+00> : vector<2x16x16xf32>
    %55 = tpu.matmul %54, %42, %cst_15 {dimension_numbers = #tpu.dot_dimension_numbers<[2], [1], [1], [2], [0, 0, 0, 1, 1, 2], [0], [0]>} : vector<2x16x16xbf16>, vector<2x16x16xbf16>, vector<2x16x16xf32> -> vector<2x16x16xf32>
    "tpu.trace_stop"() : () -> ()
    %56 = vector.extract_strided_slice %7 {offsets = [0, 32], sizes = [32, 16], strides = [1, 1]} : vector<32x192xf32> to vector<32x16xf32>
    %cst_16 = arith.constant 2.500000e-01 : f32
    %57 = vector.broadcast %cst_16 : f32 to vector<32x16xf32>
    %58 = arith.mulf %56, %57 : vector<32x16xf32>
    %59 = vector.shape_cast %58 : vector<32x16xf32> to vector<2x16x16xf32>
    %60 = arith.truncf %59 : vector<2x16x16xf32> to vector<2x16x16xbf16>
    %61 = vector.extract_strided_slice %7 {offsets = [0, 96], sizes = [32, 16], strides = [1, 1]} : vector<32x192xf32> to vector<32x16xf32>
    %62 = vector.shape_cast %61 : vector<32x16xf32> to vector<2x16x16xf32>
    %63 = arith.truncf %62 : vector<2x16x16xf32> to vector<2x16x16xbf16>
    %64 = vector.extract_strided_slice %7 {offsets = [0, 160], sizes = [32, 16], strides = [1, 1]} : vector<32x192xf32> to vector<32x16xf32>
    %65 = vector.shape_cast %64 : vector<32x16xf32> to vector<2x16x16xf32>
    %66 = arith.truncf %65 : vector<2x16x16xf32> to vector<2x16x16xbf16>
    "tpu.trace_start"() <{level = 10 : i32, message = "bqe,bke->bqk"}> : () -> ()
    %cst_17 = arith.constant dense<0.000000e+00> : vector<2x16x16xf32>
    %67 = tpu.matmul %60, %63, %cst_17 {dimension_numbers = #tpu.dot_dimension_numbers<[2], [2], [1], [1], [0, 0, 0, 1, 1, 1], [0], [0]>} : vector<2x16x16xbf16>, vector<2x16x16xbf16>, vector<2x16x16xf32> -> vector<2x16x16xf32>
    "tpu.trace_stop"() : () -> ()
    %cst_18 = arith.constant dense<0xFF800000> : vector<2x16xf32>
    %68 = vector.multi_reduction <maximumf>, %67, %cst_18 [2] : vector<2x16x16xf32> to vector<2x16xf32>
    %69 = vector.shape_cast %68 : vector<2x16xf32> to vector<2x16x1xf32>
    %70 = vector.broadcast %69 : vector<2x16x1xf32> to vector<2x16x16xf32>
    %71 = arith.subf %67, %70 : vector<2x16x16xf32>
    %72 = math.exp %71 : vector<2x16x16xf32>
    %cst_19 = arith.constant dense<0.000000e+00> : vector<2x16xf32>
    %73 = vector.multi_reduction <add>, %72, %cst_19 [2] : vector<2x16x16xf32> to vector<2x16xf32>
    %74 = vector.shape_cast %73 : vector<2x16xf32> to vector<2x16x1xf32>
    %75 = tpu.reciprocal %74 {approx = true} : vector<2x16x1xf32> -> vector<2x16x1xf32>
    %76 = vector.broadcast %75 : vector<2x16x1xf32> to vector<2x16x16xf32>
    %77 = arith.mulf %72, %76 : vector<2x16x16xf32>
    %78 = arith.truncf %77 : vector<2x16x16xf32> to vector<2x16x16xbf16>
    "tpu.trace_start"() <{level = 10 : i32, message = "bqk,bke->bqe"}> : () -> ()
    %cst_20 = arith.constant dense<0.000000e+00> : vector<2x16x16xf32>
    %79 = tpu.matmul %78, %66, %cst_20 {dimension_numbers = #tpu.dot_dimension_numbers<[2], [1], [1], [2], [0, 0, 0, 1, 1, 2], [0], [0]>} : vector<2x16x16xbf16>, vector<2x16x16xbf16>, vector<2x16x16xf32> -> vector<2x16x16xf32>
    "tpu.trace_stop"() : () -> ()
    %80 = vector.extract_strided_slice %7 {offsets = [0, 48], sizes = [32, 16], strides = [1, 1]} : vector<32x192xf32> to vector<32x16xf32>
    %cst_21 = arith.constant 2.500000e-01 : f32
    %81 = vector.broadcast %cst_21 : f32 to vector<32x16xf32>
    %82 = arith.mulf %80, %81 : vector<32x16xf32>
    %83 = vector.shape_cast %82 : vector<32x16xf32> to vector<2x16x16xf32>
    %84 = arith.truncf %83 : vector<2x16x16xf32> to vector<2x16x16xbf16>
    %85 = vector.extract_strided_slice %7 {offsets = [0, 112], sizes = [32, 16], strides = [1, 1]} : vector<32x192xf32> to vector<32x16xf32>
    %86 = vector.shape_cast %85 : vector<32x16xf32> to vector<2x16x16xf32>
    %87 = arith.truncf %86 : vector<2x16x16xf32> to vector<2x16x16xbf16>
    %88 = vector.extract_strided_slice %7 {offsets = [0, 176], sizes = [32, 16], strides = [1, 1]} : vector<32x192xf32> to vector<32x16xf32>
    %89 = vector.shape_cast %88 : vector<32x16xf32> to vector<2x16x16xf32>
    %90 = arith.truncf %89 : vector<2x16x16xf32> to vector<2x16x16xbf16>
    "tpu.trace_start"() <{level = 10 : i32, message = "bqe,bke->bqk"}> : () -> ()
    %cst_22 = arith.constant dense<0.000000e+00> : vector<2x16x16xf32>
    %91 = tpu.matmul %84, %87, %cst_22 {dimension_numbers = #tpu.dot_dimension_numbers<[2], [2], [1], [1], [0, 0, 0, 1, 1, 1], [0], [0]>} : vector<2x16x16xbf16>, vector<2x16x16xbf16>, vector<2x16x16xf32> -> vector<2x16x16xf32>
    "tpu.trace_stop"() : () -> ()
    %cst_23 = arith.constant dense<0xFF800000> : vector<2x16xf32>
    %92 = vector.multi_reduction <maximumf>, %91, %cst_23 [2] : vector<2x16x16xf32> to vector<2x16xf32>
    %93 = vector.shape_cast %92 : vector<2x16xf32> to vector<2x16x1xf32>
    %94 = vector.broadcast %93 : vector<2x16x1xf32> to vector<2x16x16xf32>
    %95 = arith.subf %91, %94 : vector<2x16x16xf32>
    %96 = math.exp %95 : vector<2x16x16xf32>
    %cst_24 = arith.constant dense<0.000000e+00> : vector<2x16xf32>
    %97 = vector.multi_reduction <add>, %96, %cst_24 [2] : vector<2x16x16xf32> to vector<2x16xf32>
    %98 = vector.shape_cast %97 : vector<2x16xf32> to vector<2x16x1xf32>
    %99 = tpu.reciprocal %98 {approx = true} : vector<2x16x1xf32> -> vector<2x16x1xf32>
    %100 = vector.broadcast %99 : vector<2x16x1xf32> to vector<2x16x16xf32>
    %101 = arith.mulf %96, %100 : vector<2x16x16xf32>
    %102 = arith.truncf %101 : vector<2x16x16xf32> to vector<2x16x16xbf16>
    "tpu.trace_start"() <{level = 10 : i32, message = "bqk,bke->bqe"}> : () -> ()
    %cst_25 = arith.constant dense<0.000000e+00> : vector<2x16x16xf32>
    %103 = tpu.matmul %102, %90, %cst_25 {dimension_numbers = #tpu.dot_dimension_numbers<[2], [1], [1], [2], [0, 0, 0, 1, 1, 2], [0], [0]>} : vector<2x16x16xbf16>, vector<2x16x16xbf16>, vector<2x16x16xf32> -> vector<2x16x16xf32>
    "tpu.trace_stop"() : () -> ()
    %104 = tpu.concatenate %31, %55, %79, %103 in 2 : vector<2x16x16xf32>, vector<2x16x16xf32>, vector<2x16x16xf32>, vector<2x16x16xf32> -> vector<2x16x64xf32>
    %105 = vector.shape_cast %104 : vector<2x16x64xf32> to vector<32x64xf32>
    %106 = arith.truncf %105 : vector<32x64xf32> to vector<32x64xbf16>
    %c0_26 = arith.constant 0 : index
    %c0_27 = arith.constant 0 : index
    %107 = vector.load %arg4[%c0_26, %c0_27] : memref<64x64xbf16, #tpu.memory_space<vmem>>, vector<64x64xbf16>
    %cst_28 = arith.constant dense<0.000000e+00> : vector<32x64xf32>
    %108 = tpu.matmul %106, %107, %cst_28 {dimension_numbers = #tpu.dot_dimension_numbers<[1], [0], [0], [1], [0, 0, 1, 1], [], []>} : vector<32x64xbf16>, vector<64x64xbf16>, vector<32x64xf32> -> vector<32x64xf32>
    %c0_29 = arith.constant 0 : index
    %c0_30 = arith.constant 0 : index
    %109 = vector.load %arg5[%c0_29, %c0_30] : memref<1x64xf32, #tpu.memory_space<vmem>>, vector<1x64xf32>
    %110 = vector.broadcast %109 : vector<1x64xf32> to vector<32x64xf32>
    %111 = arith.addf %108, %110 : vector<32x64xf32>
    %112 = arith.addf %1, %111 : vector<32x64xf32>
    %c0_31 = arith.constant 0 : index
    %c0_32 = arith.constant 0 : index
    %113 = vector.load %arg6[%c0_31, %c0_32] : memref<1x64xf32, #tpu.memory_space<vmem>>, vector<1x64xf32>
    %c0_33 = arith.constant 0 : index
    %c0_34 = arith.constant 0 : index
    %114 = vector.load %arg7[%c0_33, %c0_34] : memref<1x64xf32, #tpu.memory_space<vmem>>, vector<1x64xf32>
    %cst_35 = arith.constant dense<0.000000e+00> : vector<32xf32>
    %115 = vector.multi_reduction <add>, %112, %cst_35 [1] : vector<32x64xf32> to vector<32xf32>
    %116 = vector.shape_cast %115 : vector<32xf32> to vector<32x1xf32>
    %cst_36 = arith.constant 6.400000e+01 : f32
    %117 = vector.broadcast %cst_36 : f32 to vector<32x1xf32>
    %118 = arith.divf %116, %117 : vector<32x1xf32>
    %119 = vector.broadcast %118 : vector<32x1xf32> to vector<32x64xf32>
    %120 = arith.subf %112, %119 : vector<32x64xf32>
    %121 = arith.mulf %120, %120 : vector<32x64xf32>
    %cst_37 = arith.constant dense<0.000000e+00> : vector<32xf32>
    %122 = vector.multi_reduction <add>, %121, %cst_37 [1] : vector<32x64xf32> to vector<32xf32>
    %123 = vector.shape_cast %122 : vector<32xf32> to vector<32x1xf32>
    %cst_38 = arith.constant 6.400000e+01 : f32
    %124 = vector.broadcast %cst_38 : f32 to vector<32x1xf32>
    %125 = arith.divf %123, %124 : vector<32x1xf32>
    %cst_39 = arith.constant 9.99999974E-6 : f32
    %126 = vector.broadcast %cst_39 : f32 to vector<32x1xf32>
    %127 = arith.addf %125, %126 : vector<32x1xf32>
    %128 = math.rsqrt %127 : vector<32x1xf32>
    %129 = vector.broadcast %128 : vector<32x1xf32> to vector<32x64xf32>
    %130 = arith.mulf %120, %129 : vector<32x64xf32>
    %131 = vector.broadcast %113 : vector<1x64xf32> to vector<32x64xf32>
    %132 = arith.mulf %130, %131 : vector<32x64xf32>
    %133 = vector.broadcast %114 : vector<1x64xf32> to vector<32x64xf32>
    %134 = arith.addf %132, %133 : vector<32x64xf32>
    %135 = arith.truncf %134 : vector<32x64xf32> to vector<32x64xbf16>
    %c0_40 = arith.constant 0 : index
    %c0_41 = arith.constant 0 : index
    %136 = vector.load %arg8[%c0_40, %c0_41] : memref<64x128xbf16, #tpu.memory_space<vmem>>, vector<64x128xbf16>
    %cst_42 = arith.constant dense<0.000000e+00> : vector<32x128xf32>
    %137 = tpu.matmul %135, %136, %cst_42 {dimension_numbers = #tpu.dot_dimension_numbers<[1], [0], [0], [1], [0, 0, 1, 1], [], []>} : vector<32x64xbf16>, vector<64x128xbf16>, vector<32x128xf32> -> vector<32x128xf32>
    %c0_43 = arith.constant 0 : index
    %c0_44 = arith.constant 0 : index
    %138 = vector.load %arg9[%c0_43, %c0_44] : memref<1x128xf32, #tpu.memory_space<vmem>>, vector<1x128xf32>
    %139 = vector.broadcast %138 : vector<1x128xf32> to vector<32x128xf32>
    %140 = arith.addf %137, %139 : vector<32x128xf32>
    %141 = arith.mulf %140, %140 : vector<32x128xf32>
    %142 = arith.mulf %140, %141 : vector<32x128xf32>
    %cst_45 = arith.constant 4.471500e-02 : f32
    %143 = vector.broadcast %cst_45 : f32 to vector<32x128xf32>
    %144 = arith.mulf %143, %142 : vector<32x128xf32>
    %145 = arith.addf %140, %144 : vector<32x128xf32>
    %cst_46 = arith.constant 0.797884583 : f32
    %146 = vector.broadcast %cst_46 : f32 to vector<32x128xf32>
    %147 = arith.mulf %146, %145 : vector<32x128xf32>
    %148 = math.tanh %147 : vector<32x128xf32>
    %cst_47 = arith.constant 1.000000e+00 : f32
    %149 = vector.broadcast %cst_47 : f32 to vector<32x128xf32>
    %150 = arith.addf %149, %148 : vector<32x128xf32>
    %cst_48 = arith.constant 5.000000e-01 : f32
    %151 = vector.broadcast %cst_48 : f32 to vector<32x128xf32>
    %152 = arith.mulf %151, %150 : vector<32x128xf32>
    %153 = arith.mulf %140, %152 : vector<32x128xf32>
    %154 = arith.truncf %153 : vector<32x128xf32> to vector<32x128xbf16>
    %c0_49 = arith.constant 0 : index
    %c0_50 = arith.constant 0 : index
    %155 = vector.load %arg10[%c0_49, %c0_50] : memref<128x64xbf16, #tpu.memory_space<vmem>>, vector<128x64xbf16>
    %cst_51 = arith.constant dense<0.000000e+00> : vector<32x64xf32>
    %156 = tpu.matmul %154, %155, %cst_51 {dimension_numbers = #tpu.dot_dimension_numbers<[1], [0], [0], [1], [0, 0, 1, 1], [], []>} : vector<32x128xbf16>, vector<128x64xbf16>, vector<32x64xf32> -> vector<32x64xf32>
    %c0_52 = arith.constant 0 : index
    %c0_53 = arith.constant 0 : index
    %157 = vector.load %arg11[%c0_52, %c0_53] : memref<1x64xf32, #tpu.memory_space<vmem>>, vector<1x64xf32>
    %158 = vector.broadcast %157 : vector<1x64xf32> to vector<32x64xf32>
    %159 = arith.addf %156, %158 : vector<32x64xf32>
    %160 = arith.addf %134, %159 : vector<32x64xf32>
    %c0_54 = arith.constant 0 : index
    %c0_55 = arith.constant 0 : index
    %161 = vector.load %arg12[%c0_54, %c0_55] : memref<1x64xf32, #tpu.memory_space<vmem>>, vector<1x64xf32>
    %c0_56 = arith.constant 0 : index
    %c0_57 = arith.constant 0 : index
    %162 = vector.load %arg13[%c0_56, %c0_57] : memref<1x64xf32, #tpu.memory_space<vmem>>, vector<1x64xf32>
    %cst_58 = arith.constant dense<0.000000e+00> : vector<32xf32>
    %163 = vector.multi_reduction <add>, %160, %cst_58 [1] : vector<32x64xf32> to vector<32xf32>
    %164 = vector.shape_cast %163 : vector<32xf32> to vector<32x1xf32>
    %cst_59 = arith.constant 6.400000e+01 : f32
    %165 = vector.broadcast %cst_59 : f32 to vector<32x1xf32>
    %166 = arith.divf %164, %165 : vector<32x1xf32>
    %167 = vector.broadcast %166 : vector<32x1xf32> to vector<32x64xf32>
    %168 = arith.subf %160, %167 : vector<32x64xf32>
    %169 = arith.mulf %168, %168 : vector<32x64xf32>
    %cst_60 = arith.constant dense<0.000000e+00> : vector<32xf32>
    %170 = vector.multi_reduction <add>, %169, %cst_60 [1] : vector<32x64xf32> to vector<32xf32>
    %171 = vector.shape_cast %170 : vector<32xf32> to vector<32x1xf32>
    %cst_61 = arith.constant 6.400000e+01 : f32
    %172 = vector.broadcast %cst_61 : f32 to vector<32x1xf32>
    %173 = arith.divf %171, %172 : vector<32x1xf32>
    %cst_62 = arith.constant 9.99999974E-6 : f32
    %174 = vector.broadcast %cst_62 : f32 to vector<32x1xf32>
    %175 = arith.addf %173, %174 : vector<32x1xf32>
    %176 = math.rsqrt %175 : vector<32x1xf32>
    %177 = vector.broadcast %176 : vector<32x1xf32> to vector<32x64xf32>
    %178 = arith.mulf %168, %177 : vector<32x64xf32>
    %179 = vector.broadcast %161 : vector<1x64xf32> to vector<32x64xf32>
    %180 = arith.mulf %178, %179 : vector<32x64xf32>
    %181 = vector.broadcast %162 : vector<1x64xf32> to vector<32x64xf32>
    %182 = arith.addf %180, %181 : vector<32x64xf32>
    %183 = vector.shape_cast %182 : vector<32x64xf32> to vector<2x16x64xf32>
    %c0_63 = arith.constant 0 : index
    %c0_64 = arith.constant 0 : index
    %c0_65 = arith.constant 0 : index
    %184 = vector.load %arg14[%c0_63, %c0_64, %c0_65] : memref<2x16x64xf32, #tpu.memory_space<vmem>>, vector<2x16x64xf32>
    tpu.vector_store %arg14[%c0_63, %c0_64, %c0_65], %183 {strides = array<i32>} : memref<2x16x64xf32, #tpu.memory_space<vmem>>, vector<2x16x64xf32>,
    return
  }
  func.func @transform_0(%arg0: i32) -> (i32, i32, i32) {
    %c0_i32 = arith.constant 0 : i32
    %c0_i32_0 = arith.constant 0 : i32
    %c0_i32_1 = arith.constant 0 : i32
    return %arg0, %c0_i32, %c0_i32_0 : i32, i32, i32
  }
  func.func @transform_1(%arg0: i32) -> (i32, i32) {
    %c0_i32 = arith.constant 0 : i32
    %c0_i32_0 = arith.constant 0 : i32
    %c0_i32_1 = arith.constant 0 : i32
    return %c0_i32, %c0_i32_0 : i32, i32
  }
  func.func @transform_2(%arg0: i32) -> (i32, i32) {
    %c0_i32 = arith.constant 0 : i32
    %c0_i32_0 = arith.constant 0 : i32
    %c0_i32_1 = arith.constant 0 : i32
    return %c0_i32, %c0_i32_0 : i32, i32
  }
  func.func @transform_3(%arg0: i32) -> (i32, i32) {
    %c0_i32 = arith.constant 0 : i32
    %c0_i32_0 = arith.constant 0 : i32
    %c0_i32_1 = arith.constant 0 : i32
    return %c0_i32, %c0_i32_0 : i32, i32
  }
  func.func @transform_4(%arg0: i32) -> (i32, i32) {
    %c0_i32 = arith.constant 0 : i32
    %c0_i32_0 = arith.constant 0 : i32
    %c0_i32_1 = arith.constant 0 : i32
    return %c0_i32, %c0_i32_0 : i32, i32
  }
  func.func @transform_5(%arg0: i32) -> (i32, i32) {
    %c0_i32 = arith.constant 0 : i32
    %c0_i32_0 = arith.constant 0 : i32
    %c0_i32_1 = arith.constant 0 : i32
    return %c0_i32, %c0_i32_0 : i32, i32
  }
  func.func @transform_6(%arg0: i32) -> (i32, i32) {
    %c0_i32 = arith.constant 0 : i32
    %c0_i32_0 = arith.constant 0 : i32
    %c0_i32_1 = arith.constant 0 : i32
    return %c0_i32, %c0_i32_0 : i32, i32
  }
  func.func @transform_7(%arg0: i32) -> (i32, i32) {
    %c0_i32 = arith.constant 0 : i32
    %c0_i32_0 = arith.constant 0 : i32
    %c0_i32_1 = arith.constant 0 : i32
    return %c0_i32, %c0_i32_0 : i32, i32
  }
  func.func @transform_8(%arg0: i32) -> (i32, i32) {
    %c0_i32 = arith.constant 0 : i32
    %c0_i32_0 = arith.constant 0 : i32
    %c0_i32_1 = arith.constant 0 : i32
    return %c0_i32, %c0_i32_0 : i32, i32
  }
  func.func @transform_9(%arg0: i32) -> (i32, i32) {
    %c0_i32 = arith.constant 0 : i32
    %c0_i32_0 = arith.constant 0 : i32
    %c0_i32_1 = arith.constant 0 : i32
    return %c0_i32, %c0_i32_0 : i32, i32
  }
  func.func @transform_10(%arg0: i32) -> (i32, i32) {
    %c0_i32 = arith.constant 0 : i32
    %c0_i32_0 = arith.constant 0 : i32
    %c0_i32_1 = arith.constant 0 : i32
    return %c0_i32, %c0_i32_0 : i32, i32
  }
  func.func @transform_11(%arg0: i32) -> (i32, i32) {
    %c0_i32 = arith.constant 0 : i32
    %c0_i32_0 = arith.constant 0 : i32
    %c0_i32_1 = arith.constant 0 : i32
    return %c0_i32, %c0_i32_0 : i32, i32
  }
  func.func @transform_12(%arg0: i32) -> (i32, i32) {
    %c0_i32 = arith.constant 0 : i32
    %c0_i32_0 = arith.constant 0 : i32
    %c0_i32_1 = arith.constant 0 : i32
    return %c0_i32, %c0_i32_0 : i32, i32
  }
  func.func @transform_13(%arg0: i32) -> (i32, i32, i32) {
    %c0_i32 = arith.constant 0 : i32
    %c0_i32_0 = arith.constant 0 : i32
    %c0_i32_1 = arith.constant 0 : i32
    return %arg0, %c0_i32, %c0_i32_0 : i32, i32, i32
  }
}

</mosaic_0001>

<llo_original>
// kernel: tpu_custom_call.1
$region0: #{tpu_custom_call.1}
  #allocation0 [shape = 'u32[]', space=smem, size = 0x4, offset = 0x4, fixed_abs, tag = 'smem constant byte address 0x4 - core index']
  #allocation1 [shape = 'u32[144,128]{1,0:T(1,128)}', space=vmem, size = 0x12000, scoped, tag = 'internal scratch']
  %s0 = inlined_call_operand.vmem [shape: f32[2,16,64], index: 0, kind: input, shape index: {}]
  %s1 = inlined_call_operand.vmem [shape: bf16[64,192], index: 1, kind: input, shape index: {}]
  %s2 = inlined_call_operand.vmem [shape: f32[1,192], index: 2, kind: input, shape index: {}]
  %s3 = inlined_call_operand.hbm [shape: bf16[64,64], index: 3, kind: input, shape index: {}]
  %s4 = inlined_call_operand.hbm [shape: f32[1,64], index: 4, kind: input, shape index: {}]
  %s5 = inlined_call_operand.hbm [shape: f32[1,64], index: 5, kind: input, shape index: {}]
  %s6 = inlined_call_operand.hbm [shape: f32[1,64], index: 6, kind: input, shape index: {}]
  %s7 = inlined_call_operand.hbm [shape: bf16[64,128], index: 7, kind: input, shape index: {}]
  %s8 = inlined_call_operand.hbm [shape: f32[1,128], index: 8, kind: input, shape index: {}]
  %s9 = inlined_call_operand.vmem [shape: bf16[128,64], index: 9, kind: input, shape index: {}]
  %s10 = inlined_call_operand.vmem [shape: f32[1,64], index: 10, kind: input, shape index: {}]
  %s11 = inlined_call_operand.vmem [shape: f32[1,64], index: 11, kind: input, shape index: {}]
  %s12 = inlined_call_operand.vmem [shape: f32[1,64], index: 12, kind: input, shape index: {}]
  %s13 = inlined_call_operand.hbm [shape: f32[2,16,64], index: 13, kind: output, shape index: {}]
  %s14 = sld [smem:[#allocation0]]
  $region86: #{tpu_custom_call.1} parent=0
    _
  %s16 = ssub.s32 1, %s14
  %s17 = scalar_select 0, %s16, %s14
  $region1: #{tpu_custom_call.1} parent=0
    #allocation2 [shape = 'u8[16384]{0}', space=vmem, size = 0x4000, scoped, tag = 'input window, operand 3, single buffered']
    #allocation3 [shape = 's32[1]{0}', space=sflag, size = 0x4, scoped, tag = 'scoped memory for tpu_custom_call.1']
    #allocation4 [shape = 's32[1]{0}', space=sflag, size = 0x4, scoped, tag = 'scoped memory for tpu_custom_call.1']
    #allocation5 [shape = 'u8[512]{0}', space=vmem, size = 0x400, scoped, tag = 'input window, operand 4, single buffered']
    #allocation6 [shape = 's32[1]{0}', space=sflag, size = 0x4, scoped, tag = 'scoped memory for tpu_custom_call.1']
    #allocation7 [shape = 'u8[512]{0}', space=vmem, size = 0x400, scoped, tag = 'input window, operand 5, single buffered']
    #allocation8 [shape = 'u8[512]{0}', space=vmem, size = 0x400, scoped, tag = 'input window, operand 6, single buffered']
    #allocation9 [shape = 's32[1]{0}', space=sflag, size = 0x4, scoped, tag = 'scoped memory for tpu_custom_call.1']
    #allocation10 [shape = 'u8[16384]{0}', space=vmem, size = 0x4000, scoped, tag = 'input window, operand 7, single buffered']
    #allocation11 [shape = 'u8[512]{0}', space=vmem, size = 0x400, scoped, tag = 'input window, operand 8, single buffered']
    #allocation12 [shape = 's32[1]{0}', space=sflag, size = 0x4, scoped, tag = 'scoped memory for tpu_custom_call.1']
    #allocation13 [shape = 'u8[16384]{0}', space=vmem, size = 0x4000, scoped, tag = 'output window, operand 0, single buffered']
    %18 = vsyncpa [#allocation3], 0
    %19 = vsyncpa [#allocation6], 0
    %20 = vsyncpa [#allocation9], 0
    %21 = vsyncpa [#allocation12], 0
    %22 = vsyncpa [#allocation4], 0
    // Predicated region
    $region2: #{tpu_custom_call.1} parent=1 // pred_check
      _
    $region3: #{tpu_custom_call.1} parent=1 // pred_check_branch
      %24 = sbr.rel (0) target = $region5
    $region4: #{tpu_custom_call.1} parent=1 // pred_region
      _
    $region5: #{tpu_custom_call.1} parent=1 // pred_fallthru
      _
    // Predicated region
    $region6: #{tpu_custom_call.1} parent=1 // pred_check
      _
    $region7: #{tpu_custom_call.1} parent=1 // pred_check_branch
      %26 = sbr.rel (0) target = $region9
    $region8: #{tpu_custom_call.1} parent=1 // pred_region
      _
    $region9: #{tpu_custom_call.1} parent=1 // pred_fallthru
      _
    // Predicated region
    $region10: #{tpu_custom_call.1} parent=1 // pred_check
      _
    $region11: #{tpu_custom_call.1} parent=1 // pred_check_branch
      %28 = sbr.rel (0) target = $region13
    $region12: #{tpu_custom_call.1} parent=1 // pred_region
      _
    $region13: #{tpu_custom_call.1} parent=1 // pred_fallthru
      _
    // Predicated region
    $region14: #{tpu_custom_call.1} parent=1 // pred_check
      _
    $region15: #{tpu_custom_call.1} parent=1 // pred_check_branch
      %30 = sbr.rel (0) target = $region17
    $region16: #{tpu_custom_call.1} parent=1 // pred_region
      %s32 = ssub.s32 512, 512
      %33 = vsyncadd [#allocation3], %s32
      %s34 = sshll.u32 [#allocation2], 4
      %s35 = int_to_ptr.vmem [resolvable:$true] %s34
      %40 = dma.hbm_to_vmem [thread:$0]  %s3, 512, %s35, [#allocation3], 64, 64, 4
    $region17: #{tpu_custom_call.1} parent=1 // pred_fallthru
      _
    // Predicated region
    $region18: #{tpu_custom_call.1} parent=1 // pred_check
      _
    $region19: #{tpu_custom_call.1} parent=1 // pred_check_branch
      %42 = sbr.rel (0) target = $region21
    $region20: #{tpu_custom_call.1} parent=1 // pred_region
      %s44 = ssub.s32 16, 16
      %45 = vsyncadd [#allocation6], %s44
      %s47 = sshll.u32 [#allocation5], 4
      %s48 = int_to_ptr.vmem [resolvable:$true] %s47
      %50 = dma.hbm_to_vmem [thread:$0]  %s4, 16, %s48, [#allocation6]
    $region21: #{tpu_custom_call.1} parent=1 // pred_fallthru
      _
    // Predicated region
    $region22: #{tpu_custom_call.1} parent=1 // pred_check
      _
    $region23: #{tpu_custom_call.1} parent=1 // pred_check_branch
      %52 = sbr.rel (0) target = $region25
    $region24: #{tpu_custom_call.1} parent=1 // pred_region
      %s54 = ssub.s32 16, 16
      %55 = vsyncadd [#allocation6], %s54
      %s57 = sshll.u32 [#allocation7], 4
      %s58 = int_to_ptr.vmem [resolvable:$true] %s57
      %60 = dma.hbm_to_vmem [thread:$0]  %s5, 16, %s58, [#allocation6]
    $region25: #{tpu_custom_call.1} parent=1 // pred_fallthru
      _
    // Predicated region
    $region26: #{tpu_custom_call.1} parent=1 // pred_check
      _
    $region27: #{tpu_custom_call.1} parent=1 // pred_check_branch
      %62 = sbr.rel (0) target = $region29
    $region28: #{tpu_custom_call.1} parent=1 // pred_region
      %s64 = ssub.s32 16, 16
      %65 = vsyncadd [#allocation9], %s64
      %s67 = sshll.u32 [#allocation8], 4
      %s68 = int_to_ptr.vmem [resolvable:$true] %s67
      %70 = dma.hbm_to_vmem [thread:$0]  %s6, 16, %s68, [#allocation9]
    $region29: #{tpu_custom_call.1} parent=1 // pred_fallthru
      _
    // Predicated region
    $region30: #{tpu_custom_call.1} parent=1 // pred_check
      _
    $region31: #{tpu_custom_call.1} parent=1 // pred_check_branch
      %72 = sbr.rel (0) target = $region33
    $region32: #{tpu_custom_call.1} parent=1 // pred_region
      %s74 = ssub.s32 512, 512
      %75 = vsyncadd [#allocation9], %s74
      %s76 = sshll.u32 [#allocation10], 4
      %s77 = int_to_ptr.vmem [resolvable:$true] %s76
      %82 = dma.hbm_to_vmem [thread:$0]  %s7, 512, %s77, [#allocation9], 64, 64, 4
    $region33: #{tpu_custom_call.1} parent=1 // pred_fallthru
      _
    // Predicated region
    $region34: #{tpu_custom_call.1} parent=1 // pred_check
      _
    $region35: #{tpu_custom_call.1} parent=1 // pred_check_branch
      %84 = sbr.rel (0) target = $region37
    $region36: #{tpu_custom_call.1} parent=1 // pred_region
      %s86 = ssub.s32 16, 16
      %87 = vsyncadd [#allocation12], %s86
      %s89 = sshll.u32 [#allocation11], 4
      %s90 = int_to_ptr.vmem [resolvable:$true] %s89
      %92 = dma.hbm_to_vmem [thread:$0]  %s8, 16, %s90, [#allocation12]
    $region37: #{tpu_custom_call.1} parent=1 // pred_fallthru
      _
    // Predicated region
    $region38: #{tpu_custom_call.1} parent=1 // pred_check
      _
    $region39: #{tpu_custom_call.1} parent=1 // pred_check_branch
      %94 = sbr.rel (0) target = $region41
    $region40: #{tpu_custom_call.1} parent=1 // pred_region
      _
    $region41: #{tpu_custom_call.1} parent=1 // pred_fallthru
      _
    // Predicated region
    $region42: #{tpu_custom_call.1} parent=1 // pred_check
      _
    $region43: #{tpu_custom_call.1} parent=1 // pred_check_branch
      %96 = sbr.rel (0) target = $region45
    $region44: #{tpu_custom_call.1} parent=1 // pred_region
      _
    $region45: #{tpu_custom_call.1} parent=1 // pred_fallthru
      _
    // Predicated region
    $region46: #{tpu_custom_call.1} parent=1 // pred_check
      _
    $region47: #{tpu_custom_call.1} parent=1 // pred_check_branch
      %98 = sbr.rel (0) target = $region49
    $region48: #{tpu_custom_call.1} parent=1 // pred_region
      _
    $region49: #{tpu_custom_call.1} parent=1 // pred_fallthru
      _
    // Predicated region
    $region50: #{tpu_custom_call.1} parent=1 // pred_check
      _
    $region51: #{tpu_custom_call.1} parent=1 // pred_check_branch
      %100 = sbr.rel (0) target = $region53
    $region52: #{tpu_custom_call.1} parent=1 // pred_region
      _
    $region53: #{tpu_custom_call.1} parent=1 // pred_fallthru
      _
    // Predicated region
    $region54: #{tpu_custom_call.1} parent=1 // pred_check
      _
    $region55: #{tpu_custom_call.1} parent=1 // pred_check_branch
      %102 = sbr.rel (0) target = $region57
    $region56: #{tpu_custom_call.1} parent=1 // pred_region
      %103 = dma.done [#allocation3], 512
    $region57: #{tpu_custom_call.1} parent=1 // pred_fallthru
      _
    // Predicated region
    $region58: #{tpu_custom_call.1} parent=1 // pred_check
      _
    $region59: #{tpu_custom_call.1} parent=1 // pred_check_branch
      %105 = sbr.rel (0) target = $region61
    $region60: #{tpu_custom_call.1} parent=1 // pred_region
      %106 = dma.done [#allocation6], 16
    $region61: #{tpu_custom_call.1} parent=1 // pred_fallthru
      _
    // Predicated region
    $region62: #{tpu_custom_call.1} parent=1 // pred_check
      _
    $region63: #{tpu_custom_call.1} parent=1 // pred_check_branch
      %108 = sbr.rel (0) target = $region65
    $region64: #{tpu_custom_call.1} parent=1 // pred_region
      %109 = dma.done [#allocation6], 16
    $region65: #{tpu_custom_call.1} parent=1 // pred_fallthru
      _
    // Predicated region
    $region66: #{tpu_custom_call.1} parent=1 // pred_check
      _
    $region67: #{tpu_custom_call.1} parent=1 // pred_check_branch
      %111 = sbr.rel (0) target = $region69
    $region68: #{tpu_custom_call.1} parent=1 // pred_region
      %112 = dma.done [#allocation9], 16
    $region69: #{tpu_custom_call.1} parent=1 // pred_fallthru
      _
    // Predicated region
    $region70: #{tpu_custom_call.1} parent=1 // pred_check
      _
    $region71: #{tpu_custom_call.1} parent=1 // pred_check_branch
      %114 = sbr.rel (0) target = $region73
    $region72: #{tpu_custom_call.1} parent=1 // pred_region
      %115 = dma.done [#allocation9], 512
    $region73: #{tpu_custom_call.1} parent=1 // pred_fallthru
      _
    // Predicated region
    $region74: #{tpu_custom_call.1} parent=1 // pred_check
      _
    $region75: #{tpu_custom_call.1} parent=1 // pred_check_branch
      %117 = sbr.rel (0) target = $region77
    $region76: #{tpu_custom_call.1} parent=1 // pred_region
      %118 = dma.done [#allocation12], 16
    $region77: #{tpu_custom_call.1} parent=1 // pred_fallthru
      _
    %v120 = vld [vmem:[%s0] sm:$0xff]
    %v121 = vld [vmem:[%s0 + $0x8] sm:$0xff]
    %v122 = vld [vmem:[%s0 + $0x10] sm:$0xff]
    %v123 = vld [vmem:[%s0 + $0x18] sm:$0xff]
    %v124 = vpack.c.bf16 %v121, %v120
    %v125 = vpack.c.bf16 %v123, %v122
    %v126 = vld [vmem:[%s1] sm:$0xff]
    %v127 = vld [vmem:[%s1 + $0x8] sm:$0xff]
    %v128 = vld [vmem:[%s1 + $0x10] sm:$0xff]
    %v129 = vld [vmem:[%s1 + $0x18] sm:$0xff]
    %v130 = vld [vmem:[%s1 + $0x20] sm:$0xff]
    %v131 = vld [vmem:[%s1 + $0x28] sm:$0xff]
    %v132 = vld [vmem:[%s1 + $0x30] sm:$0xff]
    %v133 = vld [vmem:[%s1 + $0x38] sm:$0xff]
    %v134 = vld [vmem:[%s2] sm:$0x3]
    %v136 = vlaneseq
    %v137 = vshrl.u32 %v136, 7
    %v138 = vsub.s32 0, %v137
    %v139 = vrot.slane %v134, %v138
    %v140 = vlaneseq
    %v141 = vshrl.u32 %v140, 7
    %v142 = vsub.s32 1, %v141
    %v143 = vrot.slane %v134, %v142
    %v154 = vunpack.c.l.b16 %v126
    %v155 = vunpack.c.h.b16 %v126
    %v156 = vunpack.c.l.b16 %v127
    %v157 = vunpack.c.h.b16 %v127
    %v158 = vunpack.c.l.b16 %v128
    %v159 = vunpack.c.h.b16 %v128
    %v160 = vunpack.c.l.b16 %v129
    %v161 = vunpack.c.h.b16 %v129
    %v162 = vunpack.c.l.b16 %v130
    %v163 = vunpack.c.h.b16 %v130
    %v164 = vunpack.c.l.b16 %v131
    %v165 = vunpack.c.h.b16 %v131
    %v166 = vunpack.c.l.b16 %v132
    %v167 = vunpack.c.h.b16 %v132
    %v168 = vunpack.c.l.b16 %v133
    %v169 = vunpack.c.h.b16 %v133
    %v170 = vpack.c.b16 %v156, %v154
    %v171 = vpack.c.b16 %v157, %v155
    %v172 = vpack.c.b16 %v160, %v158
    %v173 = vpack.c.b16 %v161, %v159
    %v174 = vpack.c.b16 %v164, %v162
    %v175 = vpack.c.b16 %v165, %v163
    %v176 = vpack.c.b16 %v168, %v166
    %v177 = vpack.c.b16 %v169, %v167
    %vm186 = vcmask 523264
    %v188 = vsel %vm186, %v124, 0
    %v191 = vsel %vm186, %v125, 0
    %193 = vmatprep.subr.bf16.mxu0 %v171
    %194 = vmatpush1.bf16.msra.mxu0 %v170
    %195 = vmatprep.subr.bf16.mxu0 %v173
    %196 = vmatpush1.bf16.msra.mxu0 %v172
    %197 = vmatprep.subr.bf16.mxu0 %v175
    %198 = vmatpush1.bf16.msra.mxu0 %v174
    %199 = vmatprep.subr.bf16.mxu0 %v177
    %200 = vmatpush1.bf16.msra.mxu0 %v176
    %201 = vmatprep.subr.bf16.mxu0 0
    %202 = vmatpush1.bf16.msra.mxu0 0
    %203 = vmatprep.subr.bf16.mxu0 0
    %204 = vmatpush1.bf16.msra.mxu0 0
    %205 = vmatprep.subr.bf16.mxu0 0
    %206 = vmatpush1.bf16.msra.mxu0 0
    %207 = vmatprep.subr.bf16.mxu0 0
    %208 = vmatpush1.bf16.msra.mxu0 0
    %209 = vmatprep.subr.bf16.mxu0 0
    %210 = vmatpush1.bf16.msra.mxu0 0
    %211 = vmatprep.subr.bf16.mxu0 0
    %212 = vmatpush1.bf16.msra.mxu0 0
    %213 = vmatprep.subr.bf16.mxu0 0
    %214 = vmatpush1.bf16.msra.mxu0 0
    %215 = vmatprep.subr.bf16.mxu0 0
    %216 = vmatpush1.bf16.msra.mxu0 0
    %217 = vmatprep.subr.bf16.mxu0 0
    %218 = vmatpush1.bf16.msra.mxu0 0
    %219 = vmatprep.subr.bf16.mxu0 0
    %220 = vmatpush1.bf16.msra.mxu0 0
    %221 = vmatprep.subr.bf16.mxu0 0
    %222 = vmatpush1.bf16.msra.mxu0 0
    %223 = vmatprep.subr.bf16.mxu0 0
    %224 = vmatpush1.bf16.msra.mxu0 0
    %225 = vmatprep.mubr.bf16.mxu0 0
    %226 = vmatmul.mubr.bf16.gmra.mrb[0].mxu0 %v188
    %v227 = vpop.f32.mrb[0].mxu0
    %v228 = vadd.f32 %v139, %v227
    %v229 = vpop.f32.mrb[0].mxu0
    %v230 = vadd.f32 %v143, %v229
    %v231 = vpop.f32.mrb[0].mxu0
    %v232 = vadd.f32 %v139, %v231
    %v233 = vpop.f32.mrb[0].mxu0
    %v234 = vadd.f32 %v143, %v233
    %235 = vmatprep.mubr.bf16.mxu0 0
    %236 = vmatmul.mubr.bf16.gmra.mrb[0].mxu0 %v191
    %v237 = vpop.f32.mrb[0].mxu0
    %v238 = vadd.f32 %v139, %v237
    %v239 = vpop.f32.mrb[0].mxu0
    %v240 = vadd.f32 %v143, %v239
    %v241 = vpop.f32.mrb[0].mxu0
    %v242 = vadd.f32 %v139, %v241
    %v243 = vpop.f32.mrb[0].mxu0
    %v244 = vadd.f32 %v143, %v243
    %245 = vdwg.mxu0
    %v246 = vmul.f32 %v228, 0.25
    %v247 = vmul.f32 %v232, 0.25
    %v248 = vmul.f32 %v238, 0.25
    %v249 = vmul.f32 %v242, 0.25
    %v250 = vpack.c.bf16 %v247, %v246
    %v251 = vpack.c.bf16 %v249, %v248
    %v252 = vpack.c.bf16 %v232, %v228
    %v253 = vpack.c.bf16 %v242, %v238
    %v254 = vpack.c.bf16 %v234, %v230
    %v255 = vpack.c.bf16 %v244, %v240
    %257 = vrot.lane.b32.xlu0 %v252, 64
    %v258 = vpop.permute.xlu0 %257
    %vm259 = vcmask 130048
    %v261 = vsel %vm259, %v250, 0
    %v264 = vsel %vm259, %v258, 0
    %266 = vmatprep.subr.bf16.mxu0 0
    %267 = vmatpush1.bf16.xpose.msra.mxu0 %v264
    %268 = vmatprep.subr.bf16.mxu0 0
    %269 = vmatpush1.bf16.xpose.msra.mxu0 0
    %270 = vmatprep.subr.bf16.mxu0 0
    %271 = vmatpush1.bf16.xpose.msra.mxu0 0
    %272 = vmatprep.subr.bf16.mxu0 0
    %273 = vmatpush1.bf16.xpose.msra.mxu0 0
    %274 = vmatprep.subr.bf16.mxu0 0
    %275 = vmatpush1.bf16.xpose.msra.mxu0 0
    %276 = vmatprep.subr.bf16.mxu0 0
    %277 = vmatpush1.bf16.xpose.msra.mxu0 0
    %278 = vmatprep.subr.bf16.mxu0 0
    %279 = vmatpush1.bf16.xpose.msra.mxu0 0
    %280 = vmatprep.subr.bf16.mxu0 0
    %281 = vmatpush1.bf16.xpose.msra.mxu0 0
    %282 = vmatprep.subr.bf16.mxu0 0
    %283 = vmatpush1.bf16.xpose.msra.mxu0 0
    %284 = vmatprep.subr.bf16.mxu0 0
    %285 = vmatpush1.bf16.xpose.msra.mxu0 0
    %286 = vmatprep.subr.bf16.mxu0 0
    %287 = vmatpush1.bf16.xpose.msra.mxu0 0
    %288 = vmatprep.subr.bf16.mxu0 0
    %289 = vmatpush1.bf16.xpose.msra.mxu0 0
    %290 = vmatprep.subr.bf16.mxu0 0
    %291 = vmatpush1.bf16.xpose.msra.mxu0 0
    %292 = vmatprep.subr.bf16.mxu0 0
    %293 = vmatpush1.bf16.xpose.msra.mxu0 0
    %294 = vmatprep.subr.bf16.mxu0 0
    %295 = vmatpush1.bf16.xpose.msra.mxu0 0
    %296 = vmatprep.subr.bf16.mxu0 0
    %297 = vmatpush1.bf16.xpose.msra.mxu0 0
    %298 = vmatprep.mubr.bf16.mxu0 0
    %299 = vmatmul.mubr.bf16.gmra.mrb[0].mxu0 %v261
    %v300 = vpop.f32.mrb[0].mxu0
    %v301 = vadd.f32 0.0, %v300
    %v302 = vpop.f32.mrb[0].mxu0
    %v303 = vpop.f32.mrb[0].mxu0
    %v304 = vadd.f32 0.0, %v303
    %v305 = vpop.f32.mrb[0].mxu0
    %306 = vdwg.mxu0
    %308 = vrot.lane.b32.xlu0 %v253, 64
    %v309 = vpop.permute.xlu0 %308
    %v311 = vsel %vm259, %v251, 0
    %v314 = vsel %vm259, %v309, 0
    %316 = vmatprep.subr.bf16.mxu0 0
    %317 = vmatpush1.bf16.xpose.msra.mxu0 %v314
    %318 = vmatprep.subr.bf16.mxu0 0
    %319 = vmatpush1.bf16.xpose.msra.mxu0 0
    %320 = vmatprep.subr.bf16.mxu0 0
    %321 = vmatpush1.bf16.xpose.msra.mxu0 0
    %322 = vmatprep.subr.bf16.mxu0 0
    %323 = vmatpush1.bf16.xpose.msra.mxu0 0
    %324 = vmatprep.subr.bf16.mxu0 0
    %325 = vmatpush1.bf16.xpose.msra.mxu0 0
    %326 = vmatprep.subr.bf16.mxu0 0
    %327 = vmatpush1.bf16.xpose.msra.mxu0 0
    %328 = vmatprep.subr.bf16.mxu0 0
    %329 = vmatpush1.bf16.xpose.msra.mxu0 0
    %330 = vmatprep.subr.bf16.mxu0 0
    %331 = vmatpush1.bf16.xpose.msra.mxu0 0
    %332 = vmatprep.subr.bf16.mxu0 0
    %333 = vmatpush1.bf16.xpose.msra.mxu0 0
    %334 = vmatprep.subr.bf16.mxu0 0
    %335 = vmatpush1.bf16.xpose.msra.mxu0 0
    %336 = vmatprep.subr.bf16.mxu0 0
    %337 = vmatpush1.bf16.xpose.msra.mxu0 0
    %338 = vmatprep.subr.bf16.mxu0 0
    %339 = vmatpush1.bf16.xpose.msra.mxu0 0
    %340 = vmatprep.subr.bf16.mxu0 0
    %341 = vmatpush1.bf16.xpose.msra.mxu0 0
    %342 = vmatprep.subr.bf16.mxu0 0
    %343 = vmatpush1.bf16.xpose.msra.mxu0 0
    %344 = vmatprep.subr.bf16.mxu0 0
    %345 = vmatpush1.bf16.xpose.msra.mxu0 0
    %346 = vmatprep.subr.bf16.mxu0 0
    %347 = vmatpush1.bf16.xpose.msra.mxu0 0
    %348 = vmatprep.mubr.bf16.mxu0 0
    %349 = vmatmul.mubr.bf16.gmra.mrb[0].mxu0 %v311
    %v350 = vpop.f32.mrb[0].mxu0
    %v351 = vadd.f32 0.0, %v350
    %v352 = vpop.f32.mrb[0].mxu0
    %v353 = vpop.f32.mrb[0].mxu0
    %v354 = vadd.f32 0.0, %v353
    %v355 = vpop.f32.mrb[0].mxu0
    %356 = vdwg.mxu0
    %v357 = vsel %vm259, %v301, -inf
    %358 = vmax.xlane.f32.xlu0 %v357
    %v359 = vpop.xlane.xlu0 %358
    %v360 = vsel %vm259, %v304, -inf
    %361 = vmax.xlane.f32.xlu0 %v360
    %v362 = vpop.xlane.xlu0 %361
    %v363 = vsel %vm259, %v351, -inf
    %364 = vmax.xlane.f32.xlu0 %v363
    %v365 = vpop.xlane.xlu0 %364
    %v366 = vsel %vm259, %v354, -inf
    %367 = vmax.xlane.f32.xlu0 %v366
    %v368 = vpop.xlane.xlu0 %367
    %v369 = vsub.f32 %v301, %v359
    %v370 = vsub.f32 %v304, %v362
    %v371 = vsub.f32 %v351, %v365
    %v372 = vsub.f32 %v354, %v368
    %v373 = vmul.f32 %v369, 1.442695
    %v374 = vpow.pop %v373
    %v375 = vmul.f32 %v370, 1.442695
    %v376 = vpow.pop %v375
    %v377 = vmul.f32 %v371, 1.442695
    %v378 = vpow.pop %v377
    %v379 = vmul.f32 %v372, 1.442695
    %v380 = vpow.pop %v379
    %v381 = vsel %vm259, %v374, 0.0
    %382 = vadd.xlane.f32.xlu0 %v381
    %v383 = vpop.xlane.xlu0 %382
    %v384 = vsel %vm259, %v376, 0.0
    %385 = vadd.xlane.f32.xlu0 %v384
    %v386 = vpop.xlane.xlu0 %385
    %v387 = vsel %vm259, %v378, 0.0
    %388 = vadd.xlane.f32.xlu0 %v387
    %v389 = vpop.xlane.xlu0 %388
    %v390 = vsel %vm259, %v380, 0.0
    %391 = vadd.xlane.f32.xlu0 %v390
    %v392 = vpop.xlane.xlu0 %391
    %v393 = vrcp.pop %v383
    %v394 = vrcp.pop %v386
    %v395 = vrcp.pop %v389
    %v396 = vrcp.pop %v392
    %v397 = vmul.f32 %v374, %v393
    %v398 = vmul.f32 %v376, %v394
    %v399 = vmul.f32 %v378, %v395
    %v400 = vmul.f32 %v380, %v396
    %v401 = vpack.c.bf16 %v398, %v397
    %v402 = vpack.c.bf16 %v400, %v399
    %v404 = vsel %vm259, %v401, 0
    %406 = vmatprep.subr.bf16.mxu0 0
    %407 = vmatpush1.bf16.msra.mxu0 %v254
    %408 = vmatprep.subr.bf16.mxu0 0
    %409 = vmatpush1.bf16.msra.mxu0 0
    %410 = vmatprep.subr.bf16.mxu0 0
    %411 = vmatpush1.bf16.msra.mxu0 0
    %412 = vmatprep.subr.bf16.mxu0 0
    %413 = vmatpush1.bf16.msra.mxu0 0
    %414 = vmatprep.subr.bf16.mxu0 0
    %415 = vmatpush1.bf16.msra.mxu0 0
    %416 = vmatprep.subr.bf16.mxu0 0
    %417 = vmatpush1.bf16.msra.mxu0 0
    %418 = vmatprep.subr.bf16.mxu0 0
    %419 = vmatpush1.bf16.msra.mxu0 0
    %420 = vmatprep.subr.bf16.mxu0 0
    %421 = vmatpush1.bf16.msra.mxu0 0
    %422 = vmatprep.subr.bf16.mxu0 0
    %423 = vmatpush1.bf16.msra.mxu0 0
    %424 = vmatprep.subr.bf16.mxu0 0
    %425 = vmatpush1.bf16.msra.mxu0 0
    %426 = vmatprep.subr.bf16.mxu0 0
    %427 = vmatpush1.bf16.msra.mxu0 0
    %428 = vmatprep.subr.bf16.mxu0 0
    %429 = vmatpush1.bf16.msra.mxu0 0
    %430 = vmatprep.subr.bf16.mxu0 0
    %431 = vmatpush1.bf16.msra.mxu0 0
    %432 = vmatprep.subr.bf16.mxu0 0
    %433 = vmatpush1.bf16.msra.mxu0 0
    %434 = vmatprep.subr.bf16.mxu0 0
    %435 = vmatpush1.bf16.msra.mxu0 0
    %436 = vmatprep.subr.bf16.mxu0 0
    %437 = vmatpush1.bf16.msra.mxu0 0
    %438 = vmatprep.mubr.bf16.mxu0 0
    %439 = vmatmul.mubr.bf16.gmra.mrb[0].mxu0 %v404
    %v440 = vpop.f32.mrb[0].mxu0
    %v441 = vadd.f32 0.0, %v440
    %v442 = vpop.f32.mrb[0].mxu0
    %v443 = vpop.f32.mrb[0].mxu0
    %v444 = vadd.f32 0.0, %v443
    %v445 = vpop.f32.mrb[0].mxu0
    %446 = vdwg.mxu0
    %v448 = vsel %vm259, %v402, 0
    %450 = vmatprep.subr.bf16.mxu0 0
    %451 = vmatpush1.bf16.msra.mxu0 %v255
    %452 = vmatprep.subr.bf16.mxu0 0
    %453 = vmatpush1.bf16.msra.mxu0 0
    %454 = vmatprep.subr.bf16.mxu0 0
    %455 = vmatpush1.bf16.msra.mxu0 0
    %456 = vmatprep.subr.bf16.mxu0 0
    %457 = vmatpush1.bf16.msra.mxu0 0
    %458 = vmatprep.subr.bf16.mxu0 0
    %459 = vmatpush1.bf16.msra.mxu0 0
    %460 = vmatprep.subr.bf16.mxu0 0
    %461 = vmatpush1.bf16.msra.mxu0 0
    %462 = vmatprep.subr.bf16.mxu0 0
    %463 = vmatpush1.bf16.msra.mxu0 0
    %464 = vmatprep.subr.bf16.mxu0 0
    %465 = vmatpush1.bf16.msra.mxu0 0
    %466 = vmatprep.subr.bf16.mxu0 0
    %467 = vmatpush1.bf16.msra.mxu0 0
    %468 = vmatprep.subr.bf16.mxu0 0
    %469 = vmatpush1.bf16.msra.mxu0 0
    %470 = vmatprep.subr.bf16.mxu0 0
    %471 = vmatpush1.bf16.msra.mxu0 0
    %472 = vmatprep.subr.bf16.mxu0 0
    %473 = vmatpush1.bf16.msra.mxu0 0
    %474 = vmatprep.subr.bf16.mxu0 0
    %475 = vmatpush1.bf16.msra.mxu0 0
    %476 = vmatprep.subr.bf16.mxu0 0
    %477 = vmatpush1.bf16.msra.mxu0 0
    %478 = vmatprep.subr.bf16.mxu0 0
    %479 = vmatpush1.bf16.msra.mxu0 0
    %480 = vmatprep.subr.bf16.mxu0 0
    %481 = vmatpush1.bf16.msra.mxu0 0
    %482 = vmatprep.mubr.bf16.mxu0 0
    %483 = vmatmul.mubr.bf16.gmra.mrb[0].mxu0 %v448
    %v484 = vpop.f32.mrb[0].mxu0
    %v485 = vadd.f32 0.0, %v484
    %v486 = vpop.f32.mrb[0].mxu0
    %v487 = vpop.f32.mrb[0].mxu0
    %v488 = vadd.f32 0.0, %v487
    %v489 = vpop.f32.mrb[0].mxu0
    %490 = vdwg.mxu0
    %492 = vrot.lane.b32.xlu0 %v250, 112
    %v493 = vpop.permute.xlu0 %492
    %494 = vrot.lane.b32.xlu0 %v252, 48
    %v495 = vpop.permute.xlu0 %494
    %v497 = vsel %vm259, %v493, 0
    %v500 = vsel %vm259, %v495, 0
    %502 = vmatprep.subr.bf16.mxu0 0
    %503 = vmatpush1.bf16.xpose.msra.mxu0 %v500
    %504 = vmatprep.subr.bf16.mxu0 0
    %505 = vmatpush1.bf16.xpose.msra.mxu0 0
    %506 = vmatprep.subr.bf16.mxu0 0
    %507 = vmatpush1.bf16.xpose.msra.mxu0 0
    %508 = vmatprep.subr.bf16.mxu0 0
    %509 = vmatpush1.bf16.xpose.msra.mxu0 0
    %510 = vmatprep.subr.bf16.mxu0 0
    %511 = vmatpush1.bf16.xpose.msra.mxu0 0
    %512 = vmatprep.subr.bf16.mxu0 0
    %513 = vmatpush1.bf16.xpose.msra.mxu0 0
    %514 = vmatprep.subr.bf16.mxu0 0
    %515 = vmatpush1.bf16.xpose.msra.mxu0 0
    %516 = vmatprep.subr.bf16.mxu0 0
    %517 = vmatpush1.bf16.xpose.msra.mxu0 0
    %518 = vmatprep.subr.bf16.mxu0 0
    %519 = vmatpush1.bf16.xpose.msra.mxu0 0
    %520 = vmatprep.subr.bf16.mxu0 0
    %521 = vmatpush1.bf16.xpose.msra.mxu0 0
    %522 = vmatprep.subr.bf16.mxu0 0
    %523 = vmatpush1.bf16.xpose.msra.mxu0 0
    %524 = vmatprep.subr.bf16.mxu0 0
    %525 = vmatpush1.bf16.xpose.msra.mxu0 0
    %526 = vmatprep.subr.bf16.mxu0 0
    %527 = vmatpush1.bf16.xpose.msra.mxu0 0
    %528 = vmatprep.subr.bf16.mxu0 0
    %529 = vmatpush1.bf16.xpose.msra.mxu0 0
    %530 = vmatprep.subr.bf16.mxu0 0
    %531 = vmatpush1.bf16.xpose.msra.mxu0 0
    %532 = vmatprep.subr.bf16.mxu0 0
    %533 = vmatpush1.bf16.xpose.msra.mxu0 0
    %534 = vmatprep.mubr.bf16.mxu0 0
    %535 = vmatmul.mubr.bf16.gmra.mrb[0].mxu0 %v497
    %v536 = vpop.f32.mrb[0].mxu0
    %v537 = vadd.f32 0.0, %v536
    %v538 = vpop.f32.mrb[0].mxu0
    %v539 = vpop.f32.mrb[0].mxu0
    %v540 = vadd.f32 0.0, %v539
    %v541 = vpop.f32.mrb[0].mxu0
    %542 = vdwg.mxu0
    %544 = vrot.lane.b32.xlu0 %v251, 112
    %v545 = vpop.permute.xlu0 %544
    %546 = vrot.lane.b32.xlu0 %v253, 48
    %v547 = vpop.permute.xlu0 %546
    %v549 = vsel %vm259, %v545, 0
    %v552 = vsel %vm259, %v547, 0
    %554 = vmatprep.subr.bf16.mxu0 0
    %555 = vmatpush1.bf16.xpose.msra.mxu0 %v552
    %556 = vmatprep.subr.bf16.mxu0 0
    %557 = vmatpush1.bf16.xpose.msra.mxu0 0
    %558 = vmatprep.subr.bf16.mxu0 0
    %559 = vmatpush1.bf16.xpose.msra.mxu0 0
    %560 = vmatprep.subr.bf16.mxu0 0
    %561 = vmatpush1.bf16.xpose.msra.mxu0 0
    %562 = vmatprep.subr.bf16.mxu0 0
    %563 = vmatpush1.bf16.xpose.msra.mxu0 0
    %564 = vmatprep.subr.bf16.mxu0 0
    %565 = vmatpush1.bf16.xpose.msra.mxu0 0
    %566 = vmatprep.subr.bf16.mxu0 0
    %567 = vmatpush1.bf16.xpose.msra.mxu0 0
    %568 = vmatprep.subr.bf16.mxu0 0
    %569 = vmatpush1.bf16.xpose.msra.mxu0 0
    %570 = vmatprep.subr.bf16.mxu0 0
    %571 = vmatpush1.bf16.xpose.msra.mxu0 0
    %572 = vmatprep.subr.bf16.mxu0 0
    %573 = vmatpush1.bf16.xpose.msra.mxu0 0
    %574 = vmatprep.subr.bf16.mxu0 0
    %575 = vmatpush1.bf16.xpose.msra.mxu0 0
    %576 = vmatprep.subr.bf16.mxu0 0
    %577 = vmatpush1.bf16.xpose.msra.mxu0 0
    %578 = vmatprep.subr.bf16.mxu0 0
    %579 = vmatpush1.bf16.xpose.msra.mxu0 0
    %580 = vmatprep.subr.bf16.mxu0 0
    %581 = vmatpush1.bf16.xpose.msra.mxu0 0
    %582 = vmatprep.subr.bf16.mxu0 0
    %583 = vmatpush1.bf16.xpose.msra.mxu0 0
    %584 = vmatprep.subr.bf16.mxu0 0
    %585 = vmatpush1.bf16.xpose.msra.mxu0 0
    %586 = vmatprep.mubr.bf16.mxu0 0
    %587 = vmatmul.mubr.bf16.gmra.mrb[0].mxu0 %v549
    %v588 = vpop.f32.mrb[0].mxu0
    %v589 = vadd.f32 0.0, %v588
    %v590 = vpop.f32.mrb[0].mxu0
    %v591 = vpop.f32.mrb[0].mxu0
    %v592 = vadd.f32 0.0, %v591
    %v593 = vpop.f32.mrb[0].mxu0
    %594 = vdwg.mxu0
    %v595 = vsel %vm259, %v537, -inf
    %596 = vmax.xlane.f32.xlu0 %v595
    %v597 = vpop.xlane.xlu0 %596
    %v598 = vsel %vm259, %v540, -inf
    %599 = vmax.xlane.f32.xlu0 %v598
    %v600 = vpop.xlane.xlu0 %599
    %v601 = vsel %vm259, %v589, -inf
    %602 = vmax.xlane.f32.xlu0 %v601
    %v603 = vpop.xlane.xlu0 %602
    %v604 = vsel %vm259, %v592, -inf
    %605 = vmax.xlane.f32.xlu0 %v604
    %v606 = vpop.xlane.xlu0 %605
    %v607 = vsub.f32 %v537, %v597
    %v608 = vsub.f32 %v540, %v600
    %v609 = vsub.f32 %v589, %v603
    %v610 = vsub.f32 %v592, %v606
    %v611 = vmul.f32 %v607, 1.442695
    %v612 = vpow.pop %v611
    %v613 = vmul.f32 %v608, 1.442695
    %v614 = vpow.pop %v613
    %v615 = vmul.f32 %v609, 1.442695
    %v616 = vpow.pop %v615
    %v617 = vmul.f32 %v610, 1.442695
    %v618 = vpow.pop %v617
    %v619 = vsel %vm259, %v612, 0.0
    %620 = vadd.xlane.f32.xlu0 %v619
    %v621 = vpop.xlane.xlu0 %620
    %v622 = vsel %vm259, %v614, 0.0
    %623 = vadd.xlane.f32.xlu0 %v622
    %v624 = vpop.xlane.xlu0 %623
    %v625 = vsel %vm259, %v616, 0.0
    %626 = vadd.xlane.f32.xlu0 %v625
    %v627 = vpop.xlane.xlu0 %626
    %v628 = vsel %vm259, %v618, 0.0
    %629 = vadd.xlane.f32.xlu0 %v628
    %v630 = vpop.xlane.xlu0 %629
    %v631 = vrcp.pop %v621
    %v632 = vrcp.pop %v624
    %v633 = vrcp.pop %v627
    %v634 = vrcp.pop %v630
    %v635 = vmul.f32 %v612, %v631
    %v636 = vmul.f32 %v614, %v632
    %v637 = vmul.f32 %v616, %v633
    %v638 = vmul.f32 %v618, %v634
    %v639 = vpack.c.bf16 %v636, %v635
    %v640 = vpack.c.bf16 %v638, %v637
    %642 = vrot.lane.b32.xlu0 %v254, 112
    %v643 = vpop.permute.xlu0 %642
    %v646 = vsel %vm259, %v639, 0
    %648 = vmatprep.subr.bf16.mxu0 0
    %649 = vmatpush1.bf16.msra.mxu0 %v643
    %650 = vmatprep.subr.bf16.mxu0 0
    %651 = vmatpush1.bf16.msra.mxu0 0
    %652 = vmatprep.subr.bf16.mxu0 0
    %653 = vmatpush1.bf16.msra.mxu0 0
    %654 = vmatprep.subr.bf16.mxu0 0
    %655 = vmatpush1.bf16.msra.mxu0 0
    %656 = vmatprep.subr.bf16.mxu0 0
    %657 = vmatpush1.bf16.msra.mxu0 0
    %658 = vmatprep.subr.bf16.mxu0 0
    %659 = vmatpush1.bf16.msra.mxu0 0
    %660 = vmatprep.subr.bf16.mxu0 0
    %661 = vmatpush1.bf16.msra.mxu0 0
    %662 = vmatprep.subr.bf16.mxu0 0
    %663 = vmatpush1.bf16.msra.mxu0 0
    %664 = vmatprep.subr.bf16.mxu0 0
    %665 = vmatpush1.bf16.msra.mxu0 0
    %666 = vmatprep.subr.bf16.mxu0 0
    %667 = vmatpush1.bf16.msra.mxu0 0
    %668 = vmatprep.subr.bf16.mxu0 0
    %669 = vmatpush1.bf16.msra.mxu0 0
    %670 = vmatprep.subr.bf16.mxu0 0
    %671 = vmatpush1.bf16.msra.mxu0 0
    %672 = vmatprep.subr.bf16.mxu0 0
    %673 = vmatpush1.bf16.msra.mxu0 0
    %674 = vmatprep.subr.bf16.mxu0 0
    %675 = vmatpush1.bf16.msra.mxu0 0
    %676 = vmatprep.subr.bf16.mxu0 0
    %677 = vmatpush1.bf16.msra.mxu0 0
    %678 = vmatprep.subr.bf16.mxu0 0
    %679 = vmatpush1.bf16.msra.mxu0 0
    %680 = vmatprep.mubr.bf16.mxu0 0
    %681 = vmatmul.mubr.bf16.gmra.mrb[0].mxu0 %v646
    %v682 = vpop.f32.mrb[0].mxu0
    %v683 = vadd.f32 0.0, %v682
    %v684 = vpop.f32.mrb[0].mxu0
    %v685 = vpop.f32.mrb[0].mxu0
    %v686 = vadd.f32 0.0, %v685
    %v687 = vpop.f32.mrb[0].mxu0
    %688 = vdwg.mxu0
    %690 = vrot.lane.b32.xlu0 %v255, 112
    %v691 = vpop.permute.xlu0 %690
    %v694 = vsel %vm259, %v640, 0
    %696 = vmatprep.subr.bf16.mxu0 0
    %697 = vmatpush1.bf16.msra.mxu0 %v691
    %698 = vmatprep.subr.bf16.mxu0 0
    %699 = vmatpush1.bf16.msra.mxu0 0
    %700 = vmatprep.subr.bf16.mxu0 0
    %701 = vmatpush1.bf16.msra.mxu0 0
    %702 = vmatprep.subr.bf16.mxu0 0
    %703 = vmatpush1.bf16.msra.mxu0 0
    %704 = vmatprep.subr.bf16.mxu0 0
    %705 = vmatpush1.bf16.msra.mxu0 0
    %706 = vmatprep.subr.bf16.mxu0 0
    %707 = vmatpush1.bf16.msra.mxu0 0
    %708 = vmatprep.subr.bf16.mxu0 0
    %709 = vmatpush1.bf16.msra.mxu0 0
    %710 = vmatprep.subr.bf16.mxu0 0
    %711 = vmatpush1.bf16.msra.mxu0 0
    %712 = vmatprep.subr.bf16.mxu0 0
    %713 = vmatpush1.bf16.msra.mxu0 0
    %714 = vmatprep.subr.bf16.mxu0 0
    %715 = vmatpush1.bf16.msra.mxu0 0
    %716 = vmatprep.subr.bf16.mxu0 0
    %717 = vmatpush1.bf16.msra.mxu0 0
    %718 = vmatprep.subr.bf16.mxu0 0
    %719 = vmatpush1.bf16.msra.mxu0 0
    %720 = vmatprep.subr.bf16.mxu0 0
    %721 = vmatpush1.bf16.msra.mxu0 0
    %722 = vmatprep.subr.bf16.mxu0 0
    %723 = vmatpush1.bf16.msra.mxu0 0
    %724 = vmatprep.subr.bf16.mxu0 0
    %725 = vmatpush1.bf16.msra.mxu0 0
    %726 = vmatprep.subr.bf16.mxu0 0
    %727 = vmatpush1.bf16.msra.mxu0 0
    %728 = vmatprep.mubr.bf16.mxu0 0
    %729 = vmatmul.mubr.bf16.gmra.mrb[0].mxu0 %v694
    %v730 = vpop.f32.mrb[0].mxu0
    %v731 = vadd.f32 0.0, %v730
    %v732 = vpop.f32.mrb[0].mxu0
    %v733 = vpop.f32.mrb[0].mxu0
    %v734 = vadd.f32 0.0, %v733
    %v735 = vpop.f32.mrb[0].mxu0
    %736 = vdwg.mxu0
    %737 = vrot.lane.b32.xlu0 %v250, 96
    %v738 = vpop.permute.xlu0 %737
    %739 = vrot.lane.b32.xlu0 %v252, 32
    %v740 = vpop.permute.xlu0 %739
    %v742 = vsel %vm259, %v738, 0
    %v745 = vsel %vm259, %v740, 0
    %747 = vmatprep.subr.bf16.mxu0 0
    %748 = vmatpush1.bf16.xpose.msra.mxu0 %v745
    %749 = vmatprep.subr.bf16.mxu0 0
    %750 = vmatpush1.bf16.xpose.msra.mxu0 0
    %751 = vmatprep.subr.bf16.mxu0 0
    %752 = vmatpush1.bf16.xpose.msra.mxu0 0
    %753 = vmatprep.subr.bf16.mxu0 0
    %754 = vmatpush1.bf16.xpose.msra.mxu0 0
    %755 = vmatprep.subr.bf16.mxu0 0
    %756 = vmatpush1.bf16.xpose.msra.mxu0 0
    %757 = vmatprep.subr.bf16.mxu0 0
    %758 = vmatpush1.bf16.xpose.msra.mxu0 0
    %759 = vmatprep.subr.bf16.mxu0 0
    %760 = vmatpush1.bf16.xpose.msra.mxu0 0
    %761 = vmatprep.subr.bf16.mxu0 0
    %762 = vmatpush1.bf16.xpose.msra.mxu0 0
    %763 = vmatprep.subr.bf16.mxu0 0
    %764 = vmatpush1.bf16.xpose.msra.mxu0 0
    %765 = vmatprep.subr.bf16.mxu0 0
    %766 = vmatpush1.bf16.xpose.msra.mxu0 0
    %767 = vmatprep.subr.bf16.mxu0 0
    %768 = vmatpush1.bf16.xpose.msra.mxu0 0
    %769 = vmatprep.subr.bf16.mxu0 0
    %770 = vmatpush1.bf16.xpose.msra.mxu0 0
    %771 = vmatprep.subr.bf16.mxu0 0
    %772 = vmatpush1.bf16.xpose.msra.mxu0 0
    %773 = vmatprep.subr.bf16.mxu0 0
    %774 = vmatpush1.bf16.xpose.msra.mxu0 0
    %775 = vmatprep.subr.bf16.mxu0 0
    %776 = vmatpush1.bf16.xpose.msra.mxu0 0
    %777 = vmatprep.subr.bf16.mxu0 0
    %778 = vmatpush1.bf16.xpose.msra.mxu0 0
    %779 = vmatprep.mubr.bf16.mxu0 0
    %780 = vmatmul.mubr.bf16.gmra.mrb[0].mxu0 %v742
    %v781 = vpop.f32.mrb[0].mxu0
    %v782 = vadd.f32 0.0, %v781
    %v783 = vpop.f32.mrb[0].mxu0
    %v784 = vpop.f32.mrb[0].mxu0
    %v785 = vadd.f32 0.0, %v784
    %v786 = vpop.f32.mrb[0].mxu0
    %787 = vdwg.mxu0
    %788 = vrot.lane.b32.xlu0 %v251, 96
    %v789 = vpop.permute.xlu0 %788
    %790 = vrot.lane.b32.xlu0 %v253, 32
    %v791 = vpop.permute.xlu0 %790
    %v793 = vsel %vm259, %v789, 0
    %v796 = vsel %vm259, %v791, 0
    %798 = vmatprep.subr.bf16.mxu0 0
    %799 = vmatpush1.bf16.xpose.msra.mxu0 %v796
    %800 = vmatprep.subr.bf16.mxu0 0
    %801 = vmatpush1.bf16.xpose.msra.mxu0 0
    %802 = vmatprep.subr.bf16.mxu0 0
    %803 = vmatpush1.bf16.xpose.msra.mxu0 0
    %804 = vmatprep.subr.bf16.mxu0 0
    %805 = vmatpush1.bf16.xpose.msra.mxu0 0
    %806 = vmatprep.subr.bf16.mxu0 0
    %807 = vmatpush1.bf16.xpose.msra.mxu0 0
    %808 = vmatprep.subr.bf16.mxu0 0
    %809 = vmatpush1.bf16.xpose.msra.mxu0 0
    %810 = vmatprep.subr.bf16.mxu0 0
    %811 = vmatpush1.bf16.xpose.msra.mxu0 0
    %812 = vmatprep.subr.bf16.mxu0 0
    %813 = vmatpush1.bf16.xpose.msra.mxu0 0
    %814 = vmatprep.subr.bf16.mxu0 0
    %815 = vmatpush1.bf16.xpose.msra.mxu0 0
    %816 = vmatprep.subr.bf16.mxu0 0
    %817 = vmatpush1.bf16.xpose.msra.mxu0 0
    %818 = vmatprep.subr.bf16.mxu0 0
    %819 = vmatpush1.bf16.xpose.msra.mxu0 0
    %820 = vmatprep.subr.bf16.mxu0 0
    %821 = vmatpush1.bf16.xpose.msra.mxu0 0
    %822 = vmatprep.subr.bf16.mxu0 0
    %823 = vmatpush1.bf16.xpose.msra.mxu0 0
    %824 = vmatprep.subr.bf16.mxu0 0
    %825 = vmatpush1.bf16.xpose.msra.mxu0 0
    %826 = vmatprep.subr.bf16.mxu0 0
    %827 = vmatpush1.bf16.xpose.msra.mxu0 0
    %828 = vmatprep.subr.bf16.mxu0 0
    %829 = vmatpush1.bf16.xpose.msra.mxu0 0
    %830 = vmatprep.mubr.bf16.mxu0 0
    %831 = vmatmul.mubr.bf16.gmra.mrb[0].mxu0 %v793
    %v832 = vpop.f32.mrb[0].mxu0
    %v833 = vadd.f32 0.0, %v832
    %v834 = vpop.f32.mrb[0].mxu0
    %v835 = vpop.f32.mrb[0].mxu0
    %v836 = vadd.f32 0.0, %v835
    %v837 = vpop.f32.mrb[0].mxu0
    %838 = vdwg.mxu0
    %v839 = vsel %vm259, %v782, -inf
    %840 = vmax.xlane.f32.xlu0 %v839
    %v841 = vpop.xlane.xlu0 %840
    %v842 = vsel %vm259, %v785, -inf
    %843 = vmax.xlane.f32.xlu0 %v842
    %v844 = vpop.xlane.xlu0 %843
    %v845 = vsel %vm259, %v833, -inf
    %846 = vmax.xlane.f32.xlu0 %v845
    %v847 = vpop.xlane.xlu0 %846
    %v848 = vsel %vm259, %v836, -inf
    %849 = vmax.xlane.f32.xlu0 %v848
    %v850 = vpop.xlane.xlu0 %849
    %v851 = vsub.f32 %v782, %v841
    %v852 = vsub.f32 %v785, %v844
    %v853 = vsub.f32 %v833, %v847
    %v854 = vsub.f32 %v836, %v850
    %v855 = vmul.f32 %v851, 1.442695
    %v856 = vpow.pop %v855
    %v857 = vmul.f32 %v852, 1.442695
    %v858 = vpow.pop %v857
    %v859 = vmul.f32 %v853, 1.442695
    %v860 = vpow.pop %v859
    %v861 = vmul.f32 %v854, 1.442695
    %v862 = vpow.pop %v861
    %v863 = vsel %vm259, %v856, 0.0
    %864 = vadd.xlane.f32.xlu0 %v863
    %v865 = vpop.xlane.xlu0 %864
    %v866 = vsel %vm259, %v858, 0.0
    %867 = vadd.xlane.f32.xlu0 %v866
    %v868 = vpop.xlane.xlu0 %867
    %v869 = vsel %vm259, %v860, 0.0
    %870 = vadd.xlane.f32.xlu0 %v869
    %v871 = vpop.xlane.xlu0 %870
    %v872 = vsel %vm259, %v862, 0.0
    %873 = vadd.xlane.f32.xlu0 %v872
    %v874 = vpop.xlane.xlu0 %873
    %v875 = vrcp.pop %v865
    %v876 = vrcp.pop %v868
    %v877 = vrcp.pop %v871
    %v878 = vrcp.pop %v874
    %v879 = vmul.f32 %v856, %v875
    %v880 = vmul.f32 %v858, %v876
    %v881 = vmul.f32 %v860, %v877
    %v882 = vmul.f32 %v862, %v878
    %v883 = vpack.c.bf16 %v880, %v879
    %v884 = vpack.c.bf16 %v882, %v881
    %885 = vrot.lane.b32.xlu0 %v254, 96
    %v886 = vpop.permute.xlu0 %885
    %v889 = vsel %vm259, %v883, 0
    %891 = vmatprep.subr.bf16.mxu0 0
    %892 = vmatpush1.bf16.msra.mxu0 %v886
    %893 = vmatprep.subr.bf16.mxu0 0
    %894 = vmatpush1.bf16.msra.mxu0 0
    %895 = vmatprep.subr.bf16.mxu0 0
    %896 = vmatpush1.bf16.msra.mxu0 0
    %897 = vmatprep.subr.bf16.mxu0 0
    %898 = vmatpush1.bf16.msra.mxu0 0
    %899 = vmatprep.subr.bf16.mxu0 0
    %900 = vmatpush1.bf16.msra.mxu0 0
    %901 = vmatprep.subr.bf16.mxu0 0
    %902 = vmatpush1.bf16.msra.mxu0 0
    %903 = vmatprep.subr.bf16.mxu0 0
    %904 = vmatpush1.bf16.msra.mxu0 0
    %905 = vmatprep.subr.bf16.mxu0 0
    %906 = vmatpush1.bf16.msra.mxu0 0
    %907 = vmatprep.subr.bf16.mxu0 0
    %908 = vmatpush1.bf16.msra.mxu0 0
    %909 = vmatprep.subr.bf16.mxu0 0
    %910 = vmatpush1.bf16.msra.mxu0 0
    %911 = vmatprep.subr.bf16.mxu0 0
    %912 = vmatpush1.bf16.msra.mxu0 0
    %913 = vmatprep.subr.bf16.mxu0 0
    %914 = vmatpush1.bf16.msra.mxu0 0
    %915 = vmatprep.subr.bf16.mxu0 0
    %916 = vmatpush1.bf16.msra.mxu0 0
    %917 = vmatprep.subr.bf16.mxu0 0
    %918 = vmatpush1.bf16.msra.mxu0 0
    %919 = vmatprep.subr.bf16.mxu0 0
    %920 = vmatpush1.bf16.msra.mxu0 0
    %921 = vmatprep.subr.bf16.mxu0 0
    %922 = vmatpush1.bf16.msra.mxu0 0
    %923 = vmatprep.mubr.bf16.mxu0 0
    %924 = vmatmul.mubr.bf16.gmra.mrb[0].mxu0 %v889
    %v925 = vpop.f32.mrb[0].mxu0
    %v926 = vadd.f32 0.0, %v925
    %v927 = vpop.f32.mrb[0].mxu0
    %v928 = vpop.f32.mrb[0].mxu0
    %v929 = vadd.f32 0.0, %v928
    %v930 = vpop.f32.mrb[0].mxu0
    %931 = vdwg.mxu0
    %932 = vrot.lane.b32.xlu0 %v255, 96
    %v933 = vpop.permute.xlu0 %932
    %v936 = vsel %vm259, %v884, 0
    %938 = vmatprep.subr.bf16.mxu0 0
    %939 = vmatpush1.bf16.msra.mxu0 %v933
    %940 = vmatprep.subr.bf16.mxu0 0
    %941 = vmatpush1.bf16.msra.mxu0 0
    %942 = vmatprep.subr.bf16.mxu0 0
    %943 = vmatpush1.bf16.msra.mxu0 0
    %944 = vmatprep.subr.bf16.mxu0 0
    %945 = vmatpush1.bf16.msra.mxu0 0
    %946 = vmatprep.subr.bf16.mxu0 0
    %947 = vmatpush1.bf16.msra.mxu0 0
    %948 = vmatprep.subr.bf16.mxu0 0
    %949 = vmatpush1.bf16.msra.mxu0 0
    %950 = vmatprep.subr.bf16.mxu0 0
    %951 = vmatpush1.bf16.msra.mxu0 0
    %952 = vmatprep.subr.bf16.mxu0 0
    %953 = vmatpush1.bf16.msra.mxu0 0
    %954 = vmatprep.subr.bf16.mxu0 0
    %955 = vmatpush1.bf16.msra.mxu0 0
    %956 = vmatprep.subr.bf16.mxu0 0
    %957 = vmatpush1.bf16.msra.mxu0 0
    %958 = vmatprep.subr.bf16.mxu0 0
    %959 = vmatpush1.bf16.msra.mxu0 0
    %960 = vmatprep.subr.bf16.mxu0 0
    %961 = vmatpush1.bf16.msra.mxu0 0
    %962 = vmatprep.subr.bf16.mxu0 0
    %963 = vmatpush1.bf16.msra.mxu0 0
    %964 = vmatprep.subr.bf16.mxu0 0
    %965 = vmatpush1.bf16.msra.mxu0 0
    %966 = vmatprep.subr.bf16.mxu0 0
    %967 = vmatpush1.bf16.msra.mxu0 0
    %968 = vmatprep.subr.bf16.mxu0 0
    %969 = vmatpush1.bf16.msra.mxu0 0
    %970 = vmatprep.mubr.bf16.mxu0 0
    %971 = vmatmul.mubr.bf16.gmra.mrb[0].mxu0 %v936
    %v972 = vpop.f32.mrb[0].mxu0
    %v973 = vadd.f32 0.0, %v972
    %v974 = vpop.f32.mrb[0].mxu0
    %v975 = vpop.f32.mrb[0].mxu0
    %v976 = vadd.f32 0.0, %v975
    %v977 = vpop.f32.mrb[0].mxu0
    %978 = vdwg.mxu0
    %979 = vrot.lane.b32.xlu0 %v250, 80
    %v980 = vpop.permute.xlu0 %979
    %981 = vrot.lane.b32.xlu0 %v252, 16
    %v982 = vpop.permute.xlu0 %981
    %v984 = vsel %vm259, %v980, 0
    %v987 = vsel %vm259, %v982, 0
    %989 = vmatprep.subr.bf16.mxu0 0
    %990 = vmatpush1.bf16.xpose.msra.mxu0 %v987
    %991 = vmatprep.subr.bf16.mxu0 0
    %992 = vmatpush1.bf16.xpose.msra.mxu0 0
    %993 = vmatprep.subr.bf16.mxu0 0
    %994 = vmatpush1.bf16.xpose.msra.mxu0 0
    %995 = vmatprep.subr.bf16.mxu0 0
    %996 = vmatpush1.bf16.xpose.msra.mxu0 0
    %997 = vmatprep.subr.bf16.mxu0 0
    %998 = vmatpush1.bf16.xpose.msra.mxu0 0
    %999 = vmatprep.subr.bf16.mxu0 0
    %1000 = vmatpush1.bf16.xpose.msra.mxu0 0
    %1001 = vmatprep.subr.bf16.mxu0 0
    %1002 = vmatpush1.bf16.xpose.msra.mxu0 0
    %1003 = vmatprep.subr.bf16.mxu0 0
    %1004 = vmatpush1.bf16.xpose.msra.mxu0 0
    %1005 = vmatprep.subr.bf16.mxu0 0
    %1006 = vmatpush1.bf16.xpose.msra.mxu0 0
    %1007 = vmatprep.subr.bf16.mxu0 0
    %1008 = vmatpush1.bf16.xpose.msra.mxu0 0
    %1009 = vmatprep.subr.bf16.mxu0 0
    %1010 = vmatpush1.bf16.xpose.msra.mxu0 0
    %1011 = vmatprep.subr.bf16.mxu0 0
    %1012 = vmatpush1.bf16.xpose.msra.mxu0 0
    %1013 = vmatprep.subr.bf16.mxu0 0
    %1014 = vmatpush1.bf16.xpose.msra.mxu0 0
    %1015 = vmatprep.subr.bf16.mxu0 0
    %1016 = vmatpush1.bf16.xpose.msra.mxu0 0
    %1017 = vmatprep.subr.bf16.mxu0 0
    %1018 = vmatpush1.bf16.xpose.msra.mxu0 0
    %1019 = vmatprep.subr.bf16.mxu0 0
    %1020 = vmatpush1.bf16.xpose.msra.mxu0 0
    %1021 = vmatprep.mubr.bf16.mxu0 0
    %1022 = vmatmul.mubr.bf16.gmra.mrb[0].mxu0 %v984
    %v1023 = vpop.f32.mrb[0].mxu0
    %v1024 = vadd.f32 0.0, %v1023
    %v1025 = vpop.f32.mrb[0].mxu0
    %v1026 = vpop.f32.mrb[0].mxu0
    %v1027 = vadd.f32 0.0, %v1026
    %v1028 = vpop.f32.mrb[0].mxu0
    %1029 = vdwg.mxu0
    %1030 = vrot.lane.b32.xlu0 %v251, 80
    %v1031 = vpop.permute.xlu0 %1030
    %1032 = vrot.lane.b32.xlu0 %v253, 16
    %v1033 = vpop.permute.xlu0 %1032
    %v1035 = vsel %vm259, %v1031, 0
    %v1038 = vsel %vm259, %v1033, 0
    %1040 = vmatprep.subr.bf16.mxu0 0
    %1041 = vmatpush1.bf16.xpose.msra.mxu0 %v1038
    %1042 = vmatprep.subr.bf16.mxu0 0
    %1043 = vmatpush1.bf16.xpose.msra.mxu0 0
    %1044 = vmatprep.subr.bf16.mxu0 0
    %1045 = vmatpush1.bf16.xpose.msra.mxu0 0
    %1046 = vmatprep.subr.bf16.mxu0 0
    %1047 = vmatpush1.bf16.xpose.msra.mxu0 0
    %1048 = vmatprep.subr.bf16.mxu0 0
    %1049 = vmatpush1.bf16.xpose.msra.mxu0 0
    %1050 = vmatprep.subr.bf16.mxu0 0
    %1051 = vmatpush1.bf16.xpose.msra.mxu0 0
    %1052 = vmatprep.subr.bf16.mxu0 0
    %1053 = vmatpush1.bf16.xpose.msra.mxu0 0
    %1054 = vmatprep.subr.bf16.mxu0 0
    %1055 = vmatpush1.bf16.xpose.msra.mxu0 0
    %1056 = vmatprep.subr.bf16.mxu0 0
    %1057 = vmatpush1.bf16.xpose.msra.mxu0 0
    %1058 = vmatprep.subr.bf16.mxu0 0
    %1059 = vmatpush1.bf16.xpose.msra.mxu0 0
    %1060 = vmatprep.subr.bf16.mxu0 0
    %1061 = vmatpush1.bf16.xpose.msra.mxu0 0
    %1062 = vmatprep.subr.bf16.mxu0 0
    %1063 = vmatpush1.bf16.xpose.msra.mxu0 0
    %1064 = vmatprep.subr.bf16.mxu0 0
    %1065 = vmatpush1.bf16.xpose.msra.mxu0 0
    %1066 = vmatprep.subr.bf16.mxu0 0
    %1067 = vmatpush1.bf16.xpose.msra.mxu0 0
    %1068 = vmatprep.subr.bf16.mxu0 0
    %1069 = vmatpush1.bf16.xpose.msra.mxu0 0
    %1070 = vmatprep.subr.bf16.mxu0 0
    %1071 = vmatpush1.bf16.xpose.msra.mxu0 0
    %1072 = vmatprep.mubr.bf16.mxu0 0
    %1073 = vmatmul.mubr.bf16.gmra.mrb[0].mxu0 %v1035
    %v1074 = vpop.f32.mrb[0].mxu0
    %v1075 = vadd.f32 0.0, %v1074
    %v1076 = vpop.f32.mrb[0].mxu0
    %v1077 = vpop.f32.mrb[0].mxu0
    %v1078 = vadd.f32 0.0, %v1077
    %v1079 = vpop.f32.mrb[0].mxu0
    %1080 = vdwg.mxu0
    %v1081 = vsel %vm259, %v1024, -inf
    %1082 = vmax.xlane.f32.xlu0 %v1081
    %v1083 = vpop.xlane.xlu0 %1082
    %v1084 = vsel %vm259, %v1027, -inf
    %1085 = vmax.xlane.f32.xlu0 %v1084
    %v1086 = vpop.xlane.xlu0 %1085
    %v1087 = vsel %vm259, %v1075, -inf
    %1088 = vmax.xlane.f32.xlu0 %v1087
    %v1089 = vpop.xlane.xlu0 %1088
    %v1090 = vsel %vm259, %v1078, -inf
    %1091 = vmax.xlane.f32.xlu0 %v1090
    %v1092 = vpop.xlane.xlu0 %1091
    %v1093 = vsub.f32 %v1024, %v1083
    %v1094 = vsub.f32 %v1027, %v1086
    %v1095 = vsub.f32 %v1075, %v1089
    %v1096 = vsub.f32 %v1078, %v1092
    %v1097 = vmul.f32 %v1093, 1.442695
    %v1098 = vpow.pop %v1097
    %v1099 = vmul.f32 %v1094, 1.442695
    %v1100 = vpow.pop %v1099
    %v1101 = vmul.f32 %v1095, 1.442695
    %v1102 = vpow.pop %v1101
    %v1103 = vmul.f32 %v1096, 1.442695
    %v1104 = vpow.pop %v1103
    %v1105 = vsel %vm259, %v1098, 0.0
    %1106 = vadd.xlane.f32.xlu0 %v1105
    %v1107 = vpop.xlane.xlu0 %1106
    %v1108 = vsel %vm259, %v1100, 0.0
    %1109 = vadd.xlane.f32.xlu0 %v1108
    %v1110 = vpop.xlane.xlu0 %1109
    %v1111 = vsel %vm259, %v1102, 0.0
    %1112 = vadd.xlane.f32.xlu0 %v1111
    %v1113 = vpop.xlane.xlu0 %1112
    %v1114 = vsel %vm259, %v1104, 0.0
    %1115 = vadd.xlane.f32.xlu0 %v1114
    %v1116 = vpop.xlane.xlu0 %1115
    %v1117 = vrcp.pop %v1107
    %v1118 = vrcp.pop %v1110
    %v1119 = vrcp.pop %v1113
    %v1120 = vrcp.pop %v1116
    %v1121 = vmul.f32 %v1098, %v1117
    %v1122 = vmul.f32 %v1100, %v1118
    %v1123 = vmul.f32 %v1102, %v1119
    %v1124 = vmul.f32 %v1104, %v1120
    %v1125 = vpack.c.bf16 %v1122, %v1121
    %v1126 = vpack.c.bf16 %v1124, %v1123
    %1127 = vrot.lane.b32.xlu0 %v254, 80
    %v1128 = vpop.permute.xlu0 %1127
    %v1131 = vsel %vm259, %v1125, 0
    %1133 = vmatprep.subr.bf16.mxu0 0
    %1134 = vmatpush1.bf16.msra.mxu0 %v1128
    %1135 = vmatprep.subr.bf16.mxu0 0
    %1136 = vmatpush1.bf16.msra.mxu0 0
    %1137 = vmatprep.subr.bf16.mxu0 0
    %1138 = vmatpush1.bf16.msra.mxu0 0
    %1139 = vmatprep.subr.bf16.mxu0 0
    %1140 = vmatpush1.bf16.msra.mxu0 0
    %1141 = vmatprep.subr.bf16.mxu0 0
    %1142 = vmatpush1.bf16.msra.mxu0 0
    %1143 = vmatprep.subr.bf16.mxu0 0
    %1144 = vmatpush1.bf16.msra.mxu0 0
    %1145 = vmatprep.subr.bf16.mxu0 0
    %1146 = vmatpush1.bf16.msra.mxu0 0
    %1147 = vmatprep.subr.bf16.mxu0 0
    %1148 = vmatpush1.bf16.msra.mxu0 0
    %1149 = vmatprep.subr.bf16.mxu0 0
    %1150 = vmatpush1.bf16.msra.mxu0 0
    %1151 = vmatprep.subr.bf16.mxu0 0
    %1152 = vmatpush1.bf16.msra.mxu0 0
    %1153 = vmatprep.subr.bf16.mxu0 0
    %1154 = vmatpush1.bf16.msra.mxu0 0
    %1155 = vmatprep.subr.bf16.mxu0 0
    %1156 = vmatpush1.bf16.msra.mxu0 0
    %1157 = vmatprep.subr.bf16.mxu0 0
    %1158 = vmatpush1.bf16.msra.mxu0 0
    %1159 = vmatprep.subr.bf16.mxu0 0
    %1160 = vmatpush1.bf16.msra.mxu0 0
    %1161 = vmatprep.subr.bf16.mxu0 0
    %1162 = vmatpush1.bf16.msra.mxu0 0
    %1163 = vmatprep.subr.bf16.mxu0 0
    %1164 = vmatpush1.bf16.msra.mxu0 0
    %1165 = vmatprep.mubr.bf16.mxu0 0
    %1166 = vmatmul.mubr.bf16.gmra.mrb[0].mxu0 %v1131
    %v1167 = vpop.f32.mrb[0].mxu0
    %v1168 = vadd.f32 0.0, %v1167
    %v1169 = vpop.f32.mrb[0].mxu0
    %v1170 = vpop.f32.mrb[0].mxu0
    %v1171 = vadd.f32 0.0, %v1170
    %v1172 = vpop.f32.mrb[0].mxu0
    %1173 = vdwg.mxu0
    %1174 = vrot.lane.b32.xlu0 %v255, 80
    %v1175 = vpop.permute.xlu0 %1174
    %v1178 = vsel %vm259, %v1126, 0
    %1180 = vmatprep.subr.bf16.mxu0 0
    %1181 = vmatpush1.bf16.msra.mxu0 %v1175
    %1182 = vmatprep.subr.bf16.mxu0 0
    %1183 = vmatpush1.bf16.msra.mxu0 0
    %1184 = vmatprep.subr.bf16.mxu0 0
    %1185 = vmatpush1.bf16.msra.mxu0 0
    %1186 = vmatprep.subr.bf16.mxu0 0
    %1187 = vmatpush1.bf16.msra.mxu0 0
    %1188 = vmatprep.subr.bf16.mxu0 0
    %1189 = vmatpush1.bf16.msra.mxu0 0
    %1190 = vmatprep.subr.bf16.mxu0 0
    %1191 = vmatpush1.bf16.msra.mxu0 0
    %1192 = vmatprep.subr.bf16.mxu0 0
    %1193 = vmatpush1.bf16.msra.mxu0 0
    %1194 = vmatprep.subr.bf16.mxu0 0
    %1195 = vmatpush1.bf16.msra.mxu0 0
    %1196 = vmatprep.subr.bf16.mxu0 0
    %1197 = vmatpush1.bf16.msra.mxu0 0
    %1198 = vmatprep.subr.bf16.mxu0 0
    %1199 = vmatpush1.bf16.msra.mxu0 0
    %1200 = vmatprep.subr.bf16.mxu0 0
    %1201 = vmatpush1.bf16.msra.mxu0 0
    %1202 = vmatprep.subr.bf16.mxu0 0
    %1203 = vmatpush1.bf16.msra.mxu0 0
    %1204 = vmatprep.subr.bf16.mxu0 0
    %1205 = vmatpush1.bf16.msra.mxu0 0
    %1206 = vmatprep.subr.bf16.mxu0 0
    %1207 = vmatpush1.bf16.msra.mxu0 0
    %1208 = vmatprep.subr.bf16.mxu0 0
    %1209 = vmatpush1.bf16.msra.mxu0 0
    %1210 = vmatprep.subr.bf16.mxu0 0
    %1211 = vmatpush1.bf16.msra.mxu0 0
    %1212 = vmatprep.mubr.bf16.mxu0 0
    %1213 = vmatmul.mubr.bf16.gmra.mrb[0].mxu0 %v1178
    %v1214 = vpop.f32.mrb[0].mxu0
    %v1215 = vadd.f32 0.0, %v1214
    %v1216 = vpop.f32.mrb[0].mxu0
    %v1217 = vpop.f32.mrb[0].mxu0
    %v1218 = vadd.f32 0.0, %v1217
    %v1219 = vpop.f32.mrb[0].mxu0
    %1220 = vdwg.mxu0
    %1225 = vrot.lane.b32.xlu0 %v683, 16
    %v1226 = vpop.permute.xlu0 %1225
    %1227 = vrot.lane.b32.xlu0 %v686, 16
    %v1228 = vpop.permute.xlu0 %1227
    %1229 = vrot.lane.b32.xlu0 %v731, 16
    %v1230 = vpop.permute.xlu0 %1229
    %1231 = vrot.lane.b32.xlu0 %v734, 16
    %v1232 = vpop.permute.xlu0 %1231
    %1241 = vrot.lane.b32.xlu0 %v926, 32
    %v1242 = vpop.permute.xlu0 %1241
    %1243 = vrot.lane.b32.xlu0 %v929, 32
    %v1244 = vpop.permute.xlu0 %1243
    %1245 = vrot.lane.b32.xlu0 %v973, 32
    %v1246 = vpop.permute.xlu0 %1245
    %1247 = vrot.lane.b32.xlu0 %v976, 32
    %v1248 = vpop.permute.xlu0 %1247
    %1257 = vrot.lane.b32.xlu0 %v1168, 48
    %v1258 = vpop.permute.xlu0 %1257
    %1259 = vrot.lane.b32.xlu0 %v1171, 48
    %v1260 = vpop.permute.xlu0 %1259
    %1261 = vrot.lane.b32.xlu0 %v1215, 48
    %v1262 = vpop.permute.xlu0 %1261
    %1263 = vrot.lane.b32.xlu0 %v1218, 48
    %v1264 = vpop.permute.xlu0 %1263
    %v1269 = vsel %vm259, %v441, %v1226
    %v1270 = vsel %vm259, %v444, %v1228
    %v1271 = vsel %vm259, %v485, %v1230
    %v1272 = vsel %vm259, %v488, %v1232
    %vm1273 = vcmask 261120
    %v1274 = vsel %vm1273, %v1269, %v1242
    %v1275 = vsel %vm1273, %v1270, %v1244
    %v1276 = vsel %vm1273, %v1271, %v1246
    %v1277 = vsel %vm1273, %v1272, %v1248
    %vm1278 = vcmask 392192
    %v1279 = vsel %vm1278, %v1274, %v1258
    %v1280 = vsel %vm1278, %v1275, %v1260
    %v1281 = vsel %vm1278, %v1276, %v1262
    %v1282 = vsel %vm1278, %v1277, %v1264
    %v1283 = vpack.c.bf16 %v1280, %v1279
    %v1284 = vpack.c.bf16 %v1282, %v1281
    %v1285 = vld [vmem:[#allocation2] sm:$0xf]
    %v1286 = vld [vmem:[#allocation2 + $0x4] sm:$0xf]
    %v1287 = vld [vmem:[#allocation2 + $0x8] sm:$0xf]
    %v1288 = vld [vmem:[#allocation2 + $0xc] sm:$0xf]
    %v1289 = vld [vmem:[#allocation2 + $0x10] sm:$0xf]
    %v1290 = vld [vmem:[#allocation2 + $0x14] sm:$0xf]
    %v1291 = vld [vmem:[#allocation2 + $0x18] sm:$0xf]
    %v1292 = vld [vmem:[#allocation2 + $0x1c] sm:$0xf]
    %v1293 = vld [vmem:[#allocation5] sm:$0x1]
    %v1295 = vlaneseq
    %v1296 = vshrl.u32 %v1295, 7
    %v1297 = vsub.s32 0, %v1296
    %v1298 = vrot.slane %v1293, %v1297
    %v1308 = vunpack.c.l.b16 %v1285
    %v1309 = vunpack.c.l.b16 %v1286
    %v1310 = vunpack.c.l.b16 %v1287
    %v1311 = vunpack.c.l.b16 %v1288
    %v1312 = vunpack.c.l.b16 %v1289
    %v1313 = vunpack.c.l.b16 %v1290
    %v1314 = vunpack.c.l.b16 %v1291
    %v1315 = vunpack.c.l.b16 %v1292
    %v1316 = vpack.c.b16 %v1309, %v1308
    %v1317 = vpack.c.b16 %v1311, %v1310
    %v1318 = vpack.c.b16 %v1313, %v1312
    %v1319 = vpack.c.b16 %v1315, %v1314
    %v1325 = vsel %vm186, %v1283, 0
    %v1328 = vsel %vm186, %v1284, 0
    %1330 = vmatprep.subr.bf16.mxu0 0
    %1331 = vmatpush1.bf16.msra.mxu0 %v1316
    %1332 = vmatprep.subr.bf16.mxu0 0
    %1333 = vmatpush1.bf16.msra.mxu0 %v1317
    %1334 = vmatprep.subr.bf16.mxu0 0
    %1335 = vmatpush1.bf16.msra.mxu0 %v1318
    %1336 = vmatprep.subr.bf16.mxu0 0
    %1337 = vmatpush1.bf16.msra.mxu0 %v1319
    %1338 = vmatprep.subr.bf16.mxu0 0
    %1339 = vmatpush1.bf16.msra.mxu0 0
    %1340 = vmatprep.subr.bf16.mxu0 0
    %1341 = vmatpush1.bf16.msra.mxu0 0
    %1342 = vmatprep.subr.bf16.mxu0 0
    %1343 = vmatpush1.bf16.msra.mxu0 0
    %1344 = vmatprep.subr.bf16.mxu0 0
    %1345 = vmatpush1.bf16.msra.mxu0 0
    %1346 = vmatprep.subr.bf16.mxu0 0
    %1347 = vmatpush1.bf16.msra.mxu0 0
    %1348 = vmatprep.subr.bf16.mxu0 0
    %1349 = vmatpush1.bf16.msra.mxu0 0
    %1350 = vmatprep.subr.bf16.mxu0 0
    %1351 = vmatpush1.bf16.msra.mxu0 0
    %1352 = vmatprep.subr.bf16.mxu0 0
    %1353 = vmatpush1.bf16.msra.mxu0 0
    %1354 = vmatprep.subr.bf16.mxu0 0
    %1355 = vmatpush1.bf16.msra.mxu0 0
    %1356 = vmatprep.subr.bf16.mxu0 0
    %1357 = vmatpush1.bf16.msra.mxu0 0
    %1358 = vmatprep.subr.bf16.mxu0 0
    %1359 = vmatpush1.bf16.msra.mxu0 0
    %1360 = vmatprep.subr.bf16.mxu0 0
    %1361 = vmatpush1.bf16.msra.mxu0 0
    %1362 = vmatprep.mubr.bf16.mxu0 0
    %1363 = vmatmul.mubr.bf16.gmra.mrb[0].mxu0 %v1325
    %v1364 = vpop.f32.mrb[0].mxu0
    %v1365 = vadd.f32 %v1298, %v1364
    %v1366 = vpop.f32.mrb[0].mxu0
    %v1367 = vpop.f32.mrb[0].mxu0
    %v1368 = vadd.f32 %v1298, %v1367
    %v1369 = vpop.f32.mrb[0].mxu0
    %1370 = vmatprep.mubr.bf16.mxu0 0
    %1371 = vmatmul.mubr.bf16.gmra.mrb[0].mxu0 %v1328
    %v1372 = vpop.f32.mrb[0].mxu0
    %v1373 = vadd.f32 %v1298, %v1372
    %v1374 = vpop.f32.mrb[0].mxu0
    %v1375 = vpop.f32.mrb[0].mxu0
    %v1376 = vadd.f32 %v1298, %v1375
    %v1377 = vpop.f32.mrb[0].mxu0
    %1378 = vdwg.mxu0
    %v1379 = vadd.f32 %v120, %v1365
    %v1380 = vadd.f32 %v121, %v1368
    %v1381 = vadd.f32 %v122, %v1373
    %v1382 = vadd.f32 %v123, %v1376
    %v1383 = vld [vmem:[#allocation7] sm:$0x1]
    %v1384 = vld [vmem:[#allocation8] sm:$0x1]
    %v1385 = vsel %vm186, %v1379, 0.0
    %1386 = vadd.xlane.f32.xlu0 %v1385
    %v1387 = vpop.xlane.xlu0 %1386
    %v1388 = vsel %vm186, %v1380, 0.0
    %1389 = vadd.xlane.f32.xlu0 %v1388
    %v1390 = vpop.xlane.xlu0 %1389
    %v1391 = vsel %vm186, %v1381, 0.0
    %1392 = vadd.xlane.f32.xlu0 %v1391
    %v1393 = vpop.xlane.xlu0 %1392
    %v1394 = vsel %vm186, %v1382, 0.0
    %1395 = vadd.xlane.f32.xlu0 %v1394
    %v1396 = vpop.xlane.xlu0 %1395
    %v1397 = vrcp.pop 64.0
    %v1398 = vmul.f32 %v1387, %v1397
    %v1399 = vmul.f32 %v1390, %v1397
    %v1400 = vmul.f32 %v1393, %v1397
    %v1401 = vmul.f32 %v1396, %v1397
    %v1402 = vsub.f32 %v1379, %v1398
    %v1403 = vsub.f32 %v1380, %v1399
    %v1404 = vsub.f32 %v1381, %v1400
    %v1405 = vsub.f32 %v1382, %v1401
    %v1406 = vmul.f32 %v1402, %v1402
    %v1407 = vmul.f32 %v1403, %v1403
    %v1408 = vmul.f32 %v1404, %v1404
    %v1409 = vmul.f32 %v1405, %v1405
    %v1410 = vsel %vm186, %v1406, 0.0
    %1411 = vadd.xlane.f32.xlu0 %v1410
    %v1412 = vpop.xlane.xlu0 %1411
    %v1413 = vsel %vm186, %v1407, 0.0
    %1414 = vadd.xlane.f32.xlu0 %v1413
    %v1415 = vpop.xlane.xlu0 %1414
    %v1416 = vsel %vm186, %v1408, 0.0
    %1417 = vadd.xlane.f32.xlu0 %v1416
    %v1418 = vpop.xlane.xlu0 %1417
    %v1419 = vsel %vm186, %v1409, 0.0
    %1420 = vadd.xlane.f32.xlu0 %v1419
    %v1421 = vpop.xlane.xlu0 %1420
    %v1422 = vmul.f32 %v1412, %v1397
    %v1423 = vmul.f32 %v1415, %v1397
    %v1424 = vmul.f32 %v1418, %v1397
    %v1425 = vmul.f32 %v1421, %v1397
    %v1426 = vadd.f32 %v1422, 1e-05
    %v1427 = vadd.f32 %v1423, 1e-05
    %v1428 = vadd.f32 %v1424, 1e-05
    %v1429 = vadd.f32 %v1425, 1e-05
    %v1430 = vrsqrt.pop %v1426
    %v1431 = vrsqrt.pop %v1427
    %v1432 = vrsqrt.pop %v1428
    %v1433 = vrsqrt.pop %v1429
    %v1434 = vmul.f32 %v1402, %v1430
    %v1435 = vmul.f32 %v1403, %v1431
    %v1436 = vmul.f32 %v1404, %v1432
    %v1437 = vmul.f32 %v1405, %v1433
    %v1439 = vlaneseq
    %v1440 = vshrl.u32 %v1439, 7
    %v1441 = vsub.s32 0, %v1440
    %v1442 = vrot.slane %v1383, %v1441
    %v1444 = vmul.f32 %v1434, %v1442
    %v1445 = vmul.f32 %v1435, %v1442
    %v1446 = vmul.f32 %v1436, %v1442
    %v1447 = vmul.f32 %v1437, %v1442
    %v1449 = vlaneseq
    %v1450 = vshrl.u32 %v1449, 7
    %v1451 = vsub.s32 0, %v1450
    %v1452 = vrot.slane %v1384, %v1451
    %v1454 = vadd.f32 %v1444, %v1452
    %v1455 = vadd.f32 %v1445, %v1452
    %v1456 = vadd.f32 %v1446, %v1452
    %v1457 = vadd.f32 %v1447, %v1452
    %v1458 = vpack.c.bf16 %v1455, %v1454
    %v1459 = vpack.c.bf16 %v1457, %v1456
    %v1460 = vld [vmem:[#allocation10] sm:$0xf]
    %v1461 = vld [vmem:[#allocation10 + $0x4] sm:$0xf]
    %v1462 = vld [vmem:[#allocation10 + $0x8] sm:$0xf]
    %v1463 = vld [vmem:[#allocation10 + $0xc] sm:$0xf]
    %v1464 = vld [vmem:[#allocation10 + $0x10] sm:$0xf]
    %v1465 = vld [vmem:[#allocation10 + $0x14] sm:$0xf]
    %v1466 = vld [vmem:[#allocation10 + $0x18] sm:$0xf]
    %v1467 = vld [vmem:[#allocation10 + $0x1c] sm:$0xf]
    %v1468 = vld [vmem:[#allocation11] sm:$0x1]
    %v1470 = vlaneseq
    %v1471 = vshrl.u32 %v1470, 7
    %v1472 = vsub.s32 0, %v1471
    %v1473 = vrot.slane %v1468, %v1472
    %v1483 = vunpack.c.l.b16 %v1460
    %v1484 = vunpack.c.l.b16 %v1461
    %v1485 = vunpack.c.l.b16 %v1462
    %v1486 = vunpack.c.l.b16 %v1463
    %v1487 = vunpack.c.l.b16 %v1464
    %v1488 = vunpack.c.l.b16 %v1465
    %v1489 = vunpack.c.l.b16 %v1466
    %v1490 = vunpack.c.l.b16 %v1467
    %v1491 = vpack.c.b16 %v1484, %v1483
    %v1492 = vpack.c.b16 %v1486, %v1485
    %v1493 = vpack.c.b16 %v1488, %v1487
    %v1494 = vpack.c.b16 %v1490, %v1489
    %v1500 = vsel %vm186, %v1458, 0
    %v1503 = vsel %vm186, %v1459, 0
    %1505 = vmatprep.subr.bf16.mxu0 0
    %1506 = vmatpush1.bf16.msra.mxu0 %v1491
    %1507 = vmatprep.subr.bf16.mxu0 0
    %1508 = vmatpush1.bf16.msra.mxu0 %v1492
    %1509 = vmatprep.subr.bf16.mxu0 0
    %1510 = vmatpush1.bf16.msra.mxu0 %v1493
    %1511 = vmatprep.subr.bf16.mxu0 0
    %1512 = vmatpush1.bf16.msra.mxu0 %v1494
    %1513 = vmatprep.subr.bf16.mxu0 0
    %1514 = vmatpush1.bf16.msra.mxu0 0
    %1515 = vmatprep.subr.bf16.mxu0 0
    %1516 = vmatpush1.bf16.msra.mxu0 0
    %1517 = vmatprep.subr.bf16.mxu0 0
    %1518 = vmatpush1.bf16.msra.mxu0 0
    %1519 = vmatprep.subr.bf16.mxu0 0
    %1520 = vmatpush1.bf16.msra.mxu0 0
    %1521 = vmatprep.subr.bf16.mxu0 0
    %1522 = vmatpush1.bf16.msra.mxu0 0
    %1523 = vmatprep.subr.bf16.mxu0 0
    %1524 = vmatpush1.bf16.msra.mxu0 0
    %1525 = vmatprep.subr.bf16.mxu0 0
    %1526 = vmatpush1.bf16.msra.mxu0 0
    %1527 = vmatprep.subr.bf16.mxu0 0
    %1528 = vmatpush1.bf16.msra.mxu0 0
    %1529 = vmatprep.subr.bf16.mxu0 0
    %1530 = vmatpush1.bf16.msra.mxu0 0
    %1531 = vmatprep.subr.bf16.mxu0 0
    %1532 = vmatpush1.bf16.msra.mxu0 0
    %1533 = vmatprep.subr.bf16.mxu0 0
    %1534 = vmatpush1.bf16.msra.mxu0 0
    %1535 = vmatprep.subr.bf16.mxu0 0
    %1536 = vmatpush1.bf16.msra.mxu0 0
    %1537 = vmatprep.mubr.bf16.mxu0 0
    %1538 = vmatmul.mubr.bf16.gmra.mrb[0].mxu0 %v1500
    %v1539 = vpop.f32.mrb[0].mxu0
    %v1540 = vadd.f32 %v1473, %v1539
    %v1541 = vpop.f32.mrb[0].mxu0
    %v1542 = vpop.f32.mrb[0].mxu0
    %v1543 = vadd.f32 %v1473, %v1542
    %v1544 = vpop.f32.mrb[0].mxu0
    %1545 = vmatprep.mubr.bf16.mxu0 0
    %1546 = vmatmul.mubr.bf16.gmra.mrb[0].mxu0 %v1503
    %v1547 = vpop.f32.mrb[0].mxu0
    %v1548 = vadd.f32 %v1473, %v1547
    %v1549 = vpop.f32.mrb[0].mxu0
    %v1550 = vpop.f32.mrb[0].mxu0
    %v1551 = vadd.f32 %v1473, %v1550
    %v1552 = vpop.f32.mrb[0].mxu0
    %1553 = vdwg.mxu0
    %v1554 = vmul.f32 %v1540, %v1540
    %v1555 = vmul.f32 %v1543, %v1543
    %v1556 = vmul.f32 %v1548, %v1548
    %v1557 = vmul.f32 %v1551, %v1551
    %v1558 = vmul.f32 %v1540, %v1554
    %v1559 = vmul.f32 %v1543, %v1555
    %v1560 = vmul.f32 %v1548, %v1556
    %v1561 = vmul.f32 %v1551, %v1557
    %v1562 = vmul.f32 %v1558, 0.044715
    %v1563 = vmul.f32 %v1559, 0.044715
    %v1564 = vmul.f32 %v1560, 0.044715
    %v1565 = vmul.f32 %v1561, 0.044715
    %v1566 = vadd.f32 %v1540, %v1562
    %v1567 = vadd.f32 %v1543, %v1563
    %v1568 = vadd.f32 %v1548, %v1564
    %v1569 = vadd.f32 %v1551, %v1565
    %v1570 = vmul.f32 %v1566, 0.7978846
    %v1571 = vmul.f32 %v1567, 0.7978846
    %v1572 = vmul.f32 %v1568, 0.7978846
    %v1573 = vmul.f32 %v1569, 0.7978846
    %v1574 = vtanh.pop %v1570
    %v1575 = vtanh.pop %v1571
    %v1576 = vtanh.pop %v1572
    %v1577 = vtanh.pop %v1573
    %v1578 = vadd.f32 %v1574, 1.0
    %v1579 = vadd.f32 %v1575, 1.0
    %v1580 = vadd.f32 %v1576, 1.0
    %v1581 = vadd.f32 %v1577, 1.0
    %v1582 = vmul.f32 %v1578, 0.5
    %v1583 = vmul.f32 %v1579, 0.5
    %v1584 = vmul.f32 %v1580, 0.5
    %v1585 = vmul.f32 %v1581, 0.5
    %v1586 = vmul.f32 %v1540, %v1582
    %v1587 = vmul.f32 %v1543, %v1583
    %v1588 = vmul.f32 %v1548, %v1584
    %v1589 = vmul.f32 %v1551, %v1585
    %v1590 = vpack.c.bf16 %v1587, %v1586
    %v1591 = vpack.c.bf16 %v1589, %v1588
    %v1592 = vld [vmem:[%s9] sm:$0xf]
    %v1593 = vld [vmem:[%s9 + $0x4] sm:$0xf]
    %v1594 = vld [vmem:[%s9 + $0x8] sm:$0xf]
    %v1595 = vld [vmem:[%s9 + $0xc] sm:$0xf]
    %v1596 = vld [vmem:[%s9 + $0x10] sm:$0xf]
    %v1597 = vld [vmem:[%s9 + $0x14] sm:$0xf]
    %v1598 = vld [vmem:[%s9 + $0x18] sm:$0xf]
    %v1599 = vld [vmem:[%s9 + $0x1c] sm:$0xf]
    %v1600 = vld [vmem:[%s9 + $0x20] sm:$0xf]
    %v1601 = vld [vmem:[%s9 + $0x24] sm:$0xf]
    %v1602 = vld [vmem:[%s9 + $0x28] sm:$0xf]
    %v1603 = vld [vmem:[%s9 + $0x2c] sm:$0xf]
    %v1604 = vld [vmem:[%s9 + $0x30] sm:$0xf]
    %v1605 = vld [vmem:[%s9 + $0x34] sm:$0xf]
    %v1606 = vld [vmem:[%s9 + $0x38] sm:$0xf]
    %v1607 = vld [vmem:[%s9 + $0x3c] sm:$0xf]
    %v1608 = vld [vmem:[%s10] sm:$0x1]
    %v1610 = vlaneseq
    %v1611 = vshrl.u32 %v1610, 7
    %v1612 = vsub.s32 0, %v1611
    %v1613 = vrot.slane %v1608, %v1612
    %v1631 = vunpack.c.l.b16 %v1592
    %v1632 = vunpack.c.l.b16 %v1593
    %v1633 = vunpack.c.l.b16 %v1594
    %v1634 = vunpack.c.l.b16 %v1595
    %v1635 = vunpack.c.l.b16 %v1596
    %v1636 = vunpack.c.l.b16 %v1597
    %v1637 = vunpack.c.l.b16 %v1598
    %v1638 = vunpack.c.l.b16 %v1599
    %v1639 = vunpack.c.l.b16 %v1600
    %v1640 = vunpack.c.l.b16 %v1601
    %v1641 = vunpack.c.l.b16 %v1602
    %v1642 = vunpack.c.l.b16 %v1603
    %v1643 = vunpack.c.l.b16 %v1604
    %v1644 = vunpack.c.l.b16 %v1605
    %v1645 = vunpack.c.l.b16 %v1606
    %v1646 = vunpack.c.l.b16 %v1607
    %v1647 = vpack.c.b16 %v1632, %v1631
    %v1648 = vpack.c.b16 %v1634, %v1633
    %v1649 = vpack.c.b16 %v1636, %v1635
    %v1650 = vpack.c.b16 %v1638, %v1637
    %v1651 = vpack.c.b16 %v1640, %v1639
    %v1652 = vpack.c.b16 %v1642, %v1641
    %v1653 = vpack.c.b16 %v1644, %v1643
    %v1654 = vpack.c.b16 %v1646, %v1645
    %1663 = vmatprep.subr.bf16.mxu0 0
    %1664 = vmatpush1.bf16.msra.mxu0 %v1647
    %1665 = vmatprep.subr.bf16.mxu0 0
    %1666 = vmatpush1.bf16.msra.mxu0 %v1648
    %1667 = vmatprep.subr.bf16.mxu0 0
    %1668 = vmatpush1.bf16.msra.mxu0 %v1649
    %1669 = vmatprep.subr.bf16.mxu0 0
    %1670 = vmatpush1.bf16.msra.mxu0 %v1650
    %1671 = vmatprep.subr.bf16.mxu0 0
    %1672 = vmatpush1.bf16.msra.mxu0 %v1651
    %1673 = vmatprep.subr.bf16.mxu0 0
    %1674 = vmatpush1.bf16.msra.mxu0 %v1652
    %1675 = vmatprep.subr.bf16.mxu0 0
    %1676 = vmatpush1.bf16.msra.mxu0 %v1653
    %1677 = vmatprep.subr.bf16.mxu0 0
    %1678 = vmatpush1.bf16.msra.mxu0 %v1654
    %1679 = vmatprep.subr.bf16.mxu0 0
    %1680 = vmatpush1.bf16.msra.mxu0 0
    %1681 = vmatprep.subr.bf16.mxu0 0
    %1682 = vmatpush1.bf16.msra.mxu0 0
    %1683 = vmatprep.subr.bf16.mxu0 0
    %1684 = vmatpush1.bf16.msra.mxu0 0
    %1685 = vmatprep.subr.bf16.mxu0 0
    %1686 = vmatpush1.bf16.msra.mxu0 0
    %1687 = vmatprep.subr.bf16.mxu0 0
    %1688 = vmatpush1.bf16.msra.mxu0 0
    %1689 = vmatprep.subr.bf16.mxu0 0
    %1690 = vmatpush1.bf16.msra.mxu0 0
    %1691 = vmatprep.subr.bf16.mxu0 0
    %1692 = vmatpush1.bf16.msra.mxu0 0
    %1693 = vmatprep.subr.bf16.mxu0 0
    %1694 = vmatpush1.bf16.msra.mxu0 0
    %1695 = vmatprep.mubr.bf16.mxu0 0
    %1696 = vmatmul.mubr.bf16.gmra.mrb[0].mxu0 %v1590
    %v1697 = vpop.f32.mrb[0].mxu0
    %v1698 = vadd.f32 %v1613, %v1697
    %v1699 = vpop.f32.mrb[0].mxu0
    %v1700 = vpop.f32.mrb[0].mxu0
    %v1701 = vadd.f32 %v1613, %v1700
    %v1702 = vpop.f32.mrb[0].mxu0
    %1703 = vmatprep.mubr.bf16.mxu0 0
    %1704 = vmatmul.mubr.bf16.gmra.mrb[0].mxu0 %v1591
    %v1705 = vpop.f32.mrb[0].mxu0
    %v1706 = vadd.f32 %v1613, %v1705
    %v1707 = vpop.f32.mrb[0].mxu0
    %v1708 = vpop.f32.mrb[0].mxu0
    %v1709 = vadd.f32 %v1613, %v1708
    %v1710 = vpop.f32.mrb[0].mxu0
    %1711 = vdwg.mxu0
    %v1712 = vadd.f32 %v1454, %v1698
    %v1713 = vadd.f32 %v1455, %v1701
    %v1714 = vadd.f32 %v1456, %v1706
    %v1715 = vadd.f32 %v1457, %v1709
    %v1716 = vld [vmem:[%s11] sm:$0x1]
    %v1717 = vld [vmem:[%s12] sm:$0x1]
    %v1718 = vsel %vm186, %v1712, 0.0
    %1719 = vadd.xlane.f32.xlu0 %v1718
    %v1720 = vpop.xlane.xlu0 %1719
    %v1721 = vsel %vm186, %v1713, 0.0
    %1722 = vadd.xlane.f32.xlu0 %v1721
    %v1723 = vpop.xlane.xlu0 %1722
    %v1724 = vsel %vm186, %v1714, 0.0
    %1725 = vadd.xlane.f32.xlu0 %v1724
    %v1726 = vpop.xlane.xlu0 %1725
    %v1727 = vsel %vm186, %v1715, 0.0
    %1728 = vadd.xlane.f32.xlu0 %v1727
    %v1729 = vpop.xlane.xlu0 %1728
    %v1730 = vmul.f32 %v1720, %v1397
    %v1731 = vmul.f32 %v1723, %v1397
    %v1732 = vmul.f32 %v1726, %v1397
    %v1733 = vmul.f32 %v1729, %v1397
    %v1734 = vsub.f32 %v1712, %v1730
    %v1735 = vsub.f32 %v1713, %v1731
    %v1736 = vsub.f32 %v1714, %v1732
    %v1737 = vsub.f32 %v1715, %v1733
    %v1738 = vmul.f32 %v1734, %v1734
    %v1739 = vmul.f32 %v1735, %v1735
    %v1740 = vmul.f32 %v1736, %v1736
    %v1741 = vmul.f32 %v1737, %v1737
    %v1742 = vsel %vm186, %v1738, 0.0
    %1743 = vadd.xlane.f32.xlu0 %v1742
    %v1744 = vpop.xlane.xlu0 %1743
    %v1745 = vsel %vm186, %v1739, 0.0
    %1746 = vadd.xlane.f32.xlu0 %v1745
    %v1747 = vpop.xlane.xlu0 %1746
    %v1748 = vsel %vm186, %v1740, 0.0
    %1749 = vadd.xlane.f32.xlu0 %v1748
    %v1750 = vpop.xlane.xlu0 %1749
    %v1751 = vsel %vm186, %v1741, 0.0
    %1752 = vadd.xlane.f32.xlu0 %v1751
    %v1753 = vpop.xlane.xlu0 %1752
    %v1754 = vmul.f32 %v1744, %v1397
    %v1755 = vmul.f32 %v1747, %v1397
    %v1756 = vmul.f32 %v1750, %v1397
    %v1757 = vmul.f32 %v1753, %v1397
    %v1758 = vadd.f32 %v1754, 1e-05
    %v1759 = vadd.f32 %v1755, 1e-05
    %v1760 = vadd.f32 %v1756, 1e-05
    %v1761 = vadd.f32 %v1757, 1e-05
    %v1762 = vrsqrt.pop %v1758
    %v1763 = vrsqrt.pop %v1759
    %v1764 = vrsqrt.pop %v1760
    %v1765 = vrsqrt.pop %v1761
    %v1766 = vmul.f32 %v1734, %v1762
    %v1767 = vmul.f32 %v1735, %v1763
    %v1768 = vmul.f32 %v1736, %v1764
    %v1769 = vmul.f32 %v1737, %v1765
    %v1771 = vlaneseq
    %v1772 = vshrl.u32 %v1771, 7
    %v1773 = vsub.s32 0, %v1772
    %v1774 = vrot.slane %v1716, %v1773
    %v1776 = vmul.f32 %v1766, %v1774
    %v1777 = vmul.f32 %v1767, %v1774
    %v1778 = vmul.f32 %v1768, %v1774
    %v1779 = vmul.f32 %v1769, %v1774
    %v1781 = vlaneseq
    %v1782 = vshrl.u32 %v1781, 7
    %v1783 = vsub.s32 0, %v1782
    %v1784 = vrot.slane %v1717, %v1783
    %v1786 = vadd.f32 %v1776, %v1784
    %v1787 = vadd.f32 %v1777, %v1784
    %v1788 = vadd.f32 %v1778, %v1784
    %v1789 = vadd.f32 %v1779, %v1784
    %1790 = vst.msk [vmem:[#allocation13] sm:$0xff] %vm186, %v1786
    %1791 = vst.msk [vmem:[#allocation13 + $0x8] sm:$0xff] %vm186, %v1787
    %1792 = vst.msk [vmem:[#allocation13 + $0x10] sm:$0xff] %vm186, %v1788
    %1793 = vst.msk [vmem:[#allocation13 + $0x18] sm:$0xff] %vm186, %v1789
    // Predicated region
    $region78: #{tpu_custom_call.1} parent=1 // pred_check
      _
    $region79: #{tpu_custom_call.1} parent=1 // pred_check_branch
      %1795 = sbr.rel (0) target = $region81
    $region80: #{tpu_custom_call.1} parent=1 // pred_region
      %s1797 = ssub.s32 512, 512
      %1798 = vsyncadd [#allocation4], %s1797
      %s1799 = sshll.u32 [#allocation13], 4
      %s1800 = int_to_ptr.vmem [resolvable:$true] %s1799
      %1805 = dma.vmem_to_hbm [thread:$0]  %s1800, 512, %s13, [#allocation4], 128, 128, 8
    $region81: #{tpu_custom_call.1} parent=1 // pred_fallthru
      _
    // Predicated region
    $region82: #{tpu_custom_call.1} parent=1 // pred_check
      _
    $region83: #{tpu_custom_call.1} parent=1 // pred_check_branch
      %1807 = sbr.rel (0) target = $region85
    $region84: #{tpu_custom_call.1} parent=1 // pred_region
      %1808 = dma.done [#allocation4], 512
    $region85: #{tpu_custom_call.1} parent=1 // pred_fallthru
      _
    %1809 = vsyncpa [#allocation3], 1
    %1810 = vsyncpa [#allocation6], 1
    %1811 = vsyncpa [#allocation9], 1
    %1812 = vsyncpa [#allocation12], 1
    %1813 = vsyncpa [#allocation4], 1

</llo_original>
